<compile_context>
chip_gen: v7x
topology: tpu7x:2x2x1
jax: 0.10.0
libtpu: 0.0.40
codegen_flags: <defaults>
</compile_context>

<pallas_src>
import functools

import jax
import jax.numpy as jnp
from jax.experimental import pallas as pl
from jax.experimental.pallas import tpu as pltpu

LN_EPS = 1e-5  # PyTorch nn.LayerNorm default


def critic_kernel(x_ref, a_ref,                 # [bm, n_in] bf16, [bm, n_act] bf16
                  w1x_ref, w1a_ref,             # [n_in, H1] bf16, [n_act, H1] bf16
                  b1_ref, g1_ref, beta1_ref,    # [1, H1] f32 each
                  w2_ref, b2_ref,               # [H1, H2] bf16, [1, H2] f32
                  w3_ref, b3_ref,               # [1, H2] f32 (fc3 weight row), [1, 1] f32
                  q_ref,                        # [1, bm] f32  (lane-dense output)
                  *, ln_out_dtype):
    # ----- fc1 on split [x | action] operands: two small MXU passes, f32 acc -----
    h1 = (jnp.dot(x_ref[...], w1x_ref[...], preferred_element_type=jnp.float32)
          + jnp.dot(a_ref[...], w1a_ref[...], preferred_element_type=jnp.float32)
          + b1_ref[...])

    # ----- LayerNorm(400): biased variance, eps inside rsqrt, all stats in f32 -----
    mean = jnp.mean(h1, axis=-1, keepdims=True)
    centered = h1 - mean
    var = jnp.mean(centered * centered, axis=-1, keepdims=True)
    h1n = centered * jax.lax.rsqrt(var + LN_EPS) * g1_ref[...] + beta1_ref[...]

    # ----- ReLU (bf16 on v6e/v7x to halve live vregs; f32 on v5e) -> fc2 -> ReLU -----
    h1r = jnp.maximum(h1n.astype(ln_out_dtype), 0.0)
    h2 = jnp.dot(h1r.astype(jnp.bfloat16), w2_ref[...],
                 preferred_element_type=jnp.float32) + b2_ref[...]
    h2r = jnp.maximum(h2, 0.0)

    # ----- fc3 (output width 1): VPU multiply + lane reduction, then one XLU
    #       relayout so the batch lands on the lane axis for a dense store -----
    q = jnp.sum(h2r * w3_ref[...], axis=1)                    # [bm]
    q_ref[...] = (q[None, :] + b3_ref[...]).astype(q_ref.dtype)   # [1, bm]


def _round_up(x, m):
    return (x + m - 1) // m * m


def _device_kind():
    try:
        return jax.devices()[0].device_kind.lower()
    except Exception:
        return ""


def _pick_bm(B, bm):
    """Generation-aware batch tile (sublane/lane aligned)."""
    if bm is None:
        kind = _device_kind()
        if ("v7" in kind or "7x" in kind) and B > 128:
            # v7x: 2 TensorCores/chip -> keep >=2 grid steps so the "parallel"
            # batch axis is actually split across cores.
            bm = 128
        else:
            # v5e/v6e: single TC -> one big tile avoids per-step overhead and
            # (on v6e) fills the 256-row MXU.
            bm = 512
    if bm >= B:
        return _round_up(B, 8)               # single grid step
    return max(128, _round_up(bm, 128))      # multi-step: lane-aligned output blocks


def critic_forward(x, action, params, *, bm=None):
    """x: [B, num_inputs], action: [B, num_actions] -> q: [B, 1] (float32)."""
    B, n_in = x.shape
    _, n_act = action.shape
    (w1x, w1a, b1, g1, beta1, w2, b2, w3, b3) = params
    H1 = w1x.shape[1]   # 400
    H2 = w2.shape[1]    # 300

    kind = _device_kind()
    ln_out_dtype = jnp.float32 if "v5" in kind else jnp.bfloat16

    bm = _pick_bm(B, bm)
    n_tiles = pl.cdiv(B, bm)
    B_pad = n_tiles * bm

    # bf16 activations: halves the per-step activation DMA and drops the
    # in-kernel cast pass (fuses with whatever produced x/action under jit).
    x = x.astype(jnp.bfloat16)
    action = action.astype(jnp.bfloat16)
    if B_pad != B:
        # Zero rows go through LayerNorm with var=0; LN_EPS keeps them finite
        # and they are sliced off below.
        x = jnp.pad(x, ((0, B_pad - B), (0, 0)))
        action = jnp.pad(action, ((0, B_pad - B), (0, 0)))

    def batch_spec(feat):
        return pl.BlockSpec((bm, feat), lambda i: (i, 0))

    def full_spec(shape):
        # Constant index_map: operand is grid-invariant (stays VMEM-resident).
        return pl.BlockSpec(shape, lambda i: (0,) * len(shape))

    flops = 2 * B_pad * (n_in * H1 + n_act * H1 + H1 * H2 + H2) + 8 * B_pad * H1
    bytes_accessed = (
        B_pad * (n_in + n_act) * 2            # bf16 activations in
        + B_pad * 4                           # f32 q out
        + ((n_in + n_act) * H1 + H1 * H2) * 2  # bf16 matmul weights
        + (3 * H1 + 2 * H2 + 1) * 4)          # f32 biases / LN affine / fc3 row

    out = pl.pallas_call(
        functools.partial(critic_kernel, ln_out_dtype=ln_out_dtype),
        out_shape=jax.ShapeDtypeStruct((1, B_pad), jnp.float32),
        grid_spec=pltpu.PrefetchScalarGridSpec(
            num_scalar_prefetch=0,
            grid=(n_tiles,),
            in_specs=[
                batch_spec(n_in),            # x
                batch_spec(n_act),           # action
                full_spec((n_in, H1)),       # W1 (state part), bf16
                full_spec((n_act, H1)),      # W1 (action part), bf16
                full_spec((1, H1)),          # b1
                full_spec((1, H1)),          # ln1 gamma
                full_spec((1, H1)),          # ln1 beta
                full_spec((H1, H2)),         # W2, bf16
                full_spec((1, H2)),          # b2
                full_spec((1, H2)),          # W3 as a row
                full_spec((1, 1)),           # b3
            ],
            # Lane-dense output: block i covers columns [i*bm, (i+1)*bm).
            out_specs=pl.BlockSpec((1, bm), lambda i: (0, i)),
        ),
        compiler_params=pltpu.CompilerParams(
            dimension_semantics=("parallel",),   # megacore-splits the batch on v7x
        ),
        cost_estimate=pl.CostEstimate(
            flops=int(flops),
            transcendentals=int(B_pad),          # one rsqrt per row
            bytes_accessed=int(bytes_accessed)),
    )(x, action, w1x, w1a, b1, g1, beta1, w2, b2, w3, b3)

    # (1, B_pad) lane-major row -> (B, 1) column (contiguous slice + free reshape).
    return out[0, :B].reshape(B, 1)


def init_params(key, num_inputs, num_actions, h1=400, h2=300):
    """Deterministic synthetic init mirroring the PyTorch module's shapes.

    fc1's weight is stored split over [state | action] and pre-transposed to
    [in_features, out_features]; fc1/fc2 matmul weights are bf16 (MXU),
    everything else stays f32.
    """
    ks = jax.random.split(key, 7)
    w1x = (jax.random.normal(ks[0], (num_inputs, h1), jnp.float32) * 0.05
           ).astype(jnp.bfloat16)
    w1a = (jax.random.normal(ks[1], (num_actions, h1), jnp.float32) * 0.05
           ).astype(jnp.bfloat16)
    b1 = jax.random.normal(ks[2], (1, h1), jnp.float32) * 0.01
    g1 = jnp.ones((1, h1), jnp.float32)            # LayerNorm weight init
    beta1 = jnp.zeros((1, h1), jnp.float32)        # LayerNorm bias init
    w2 = (jax.random.normal(ks[3], (h1, h2), jnp.float32) * 0.05
          ).astype(jnp.bfloat16)
    b2 = jax.random.normal(ks[4], (1, h2), jnp.float32) * 0.01
    w3 = jax.random.normal(ks[5], (1, h2), jnp.float32) * 0.05   # fc3 weight as a row
    b3 = jax.random.normal(ks[6], (1, 1), jnp.float32) * 0.01
    return (w1x, w1a, b1, g1, beta1, w2, b2, w3, b3)


def critic_ref(x, action, params):
    """Pure-JAX f32 reference (same bf16-quantized weights / inputs)."""
    (w1x, w1a, b1, g1, beta1, w2, b2, w3, b3) = params
    xb = x.astype(jnp.bfloat16).astype(jnp.float32)
    ab = action.astype(jnp.bfloat16).astype(jnp.float32)
    h1 = xb @ w1x.astype(jnp.float32) + ab @ w1a.astype(jnp.float32) + b1
    mean = jnp.mean(h1, axis=-1, keepdims=True)
    var = jnp.mean((h1 - mean) ** 2, axis=-1, keepdims=True)
    h1 = (h1 - mean) / jnp.sqrt(var + LN_EPS) * g1 + beta1
    h1 = jnp.maximum(h1, 0.0)
    h2 = jnp.maximum(h1 @ w2.astype(jnp.float32) + b2, 0.0)
    return h2 @ w3.T + b3


if __name__ == "__main__":
    # HalfCheetah-ish sizes at a small batch: obs dim 17, action dim 6, B=32.
    B, NUM_INPUTS, NUM_ACTIONS = 32, 17, 6

    key = jax.random.PRNGKey(0)
    k_x, k_a, k_p = jax.random.split(key, 3)
    x = jax.random.normal(k_x, (B, NUM_INPUTS), jnp.float32)
    action = jax.random.normal(k_a, (B, NUM_ACTIONS), jnp.float32)
    params = init_params(k_p, NUM_INPUTS, NUM_ACTIONS)

    q = critic_forward(x, action, params)
    q = jax.block_until_ready(q)

    q_ref = critic_ref(x, action, params)
    assert q.shape == (B, 1)
    # bf16 matmul inputs / bf16 post-LN activation with f32 accumulation
    # -> loosened tolerance vs the f32 reference.
    assert jnp.allclose(q, q_ref, atol=3e-2, rtol=3e-2), (
        float(jnp.max(jnp.abs(q - q_ref))), q[:4], q_ref[:4])

    print("KERNEL_OK")
</pallas_src>

<mosaic_0001>
module attributes {stable_mosaic.version = 11 : i64} {
  func.func @critic_kernel(%arg0: i32, %arg1: memref<32x17xbf16, #tpu.memory_space<vmem>>, %arg2: memref<32x6xbf16, #tpu.memory_space<vmem>>, %arg3: memref<17x400xbf16, #tpu.memory_space<vmem>>, %arg4: memref<6x400xbf16, #tpu.memory_space<vmem>>, %arg5: memref<1x400xf32, #tpu.memory_space<vmem>>, %arg6: memref<1x400xf32, #tpu.memory_space<vmem>>, %arg7: memref<1x400xf32, #tpu.memory_space<vmem>>, %arg8: memref<400x300xbf16, #tpu.memory_space<vmem>>, %arg9: memref<1x300xf32, #tpu.memory_space<vmem>>, %arg10: memref<1x300xf32, #tpu.memory_space<vmem>>, %arg11: memref<1x1xf32, #tpu.memory_space<vmem>>, %arg12: memref<1x32xf32, #tpu.memory_space<vmem>>) attributes {dimension_semantics = [#tpu.dimension_semantics<parallel>], iteration_bounds = array<i64: 1>, scalar_prefetch = 0 : i64, scratch_operands = 0 : i64, tpu.core_type = #tpu.core_type<tc>, window_params = [{transform_indices = @transform_0, window_bounds = array<i64: 32, 17>}, {transform_indices = @transform_1, window_bounds = array<i64: 32, 6>}, {pipeline_mode = #tpu.pipeline_mode<synchronous>, transform_indices = @transform_2, window_bounds = array<i64: 17, 400>}, {pipeline_mode = #tpu.pipeline_mode<synchronous>, transform_indices = @transform_3, window_bounds = array<i64: 6, 400>}, {pipeline_mode = #tpu.pipeline_mode<synchronous>, transform_indices = @transform_4, window_bounds = array<i64: 1, 400>}, {pipeline_mode = #tpu.pipeline_mode<synchronous>, transform_indices = @transform_5, window_bounds = array<i64: 1, 400>}, {pipeline_mode = #tpu.pipeline_mode<synchronous>, transform_indices = @transform_6, window_bounds = array<i64: 1, 400>}, {pipeline_mode = #tpu.pipeline_mode<synchronous>, transform_indices = @transform_7, window_bounds = array<i64: 400, 300>}, {pipeline_mode = #tpu.pipeline_mode<synchronous>, transform_indices = @transform_8, window_bounds = array<i64: 1, 300>}, {pipeline_mode = #tpu.pipeline_mode<synchronous>, transform_indices = @transform_9, window_bounds = array<i64: 1, 300>}, {pipeline_mode = #tpu.pipeline_mode<synchronous>, transform_indices = @transform_10, window_bounds = array<i64: 1, 1>}, {transform_indices = @transform_11, window_bounds = array<i64: 1, 32>}]} {
    %c0 = arith.constant 0 : index
    %c0_0 = arith.constant 0 : index
    %0 = vector.load %arg1[%c0, %c0_0] : memref<32x17xbf16, #tpu.memory_space<vmem>>, vector<32x17xbf16>
    %c0_1 = arith.constant 0 : index
    %c0_2 = arith.constant 0 : index
    %1 = vector.load %arg3[%c0_1, %c0_2] : memref<17x400xbf16, #tpu.memory_space<vmem>>, vector<17x400xbf16>
    %cst = arith.constant dense<0.000000e+00> : vector<32x400xf32>
    %2 = tpu.matmul %0, %1, %cst {dimension_numbers = #tpu.dot_dimension_numbers<[1], [0], [0], [1], [0, 0, 1, 1], [], []>} : vector<32x17xbf16>, vector<17x400xbf16>, vector<32x400xf32> -> vector<32x400xf32>
    %c0_3 = arith.constant 0 : index
    %c0_4 = arith.constant 0 : index
    %3 = vector.load %arg2[%c0_3, %c0_4] : memref<32x6xbf16, #tpu.memory_space<vmem>>, vector<32x6xbf16>
    %c0_5 = arith.constant 0 : index
    %c0_6 = arith.constant 0 : index
    %4 = vector.load %arg4[%c0_5, %c0_6] : memref<6x400xbf16, #tpu.memory_space<vmem>>, vector<6x400xbf16>
    %cst_7 = arith.constant dense<0.000000e+00> : vector<32x400xf32>
    %5 = tpu.matmul %3, %4, %cst_7 {dimension_numbers = #tpu.dot_dimension_numbers<[1], [0], [0], [1], [0, 0, 1, 1], [], []>} : vector<32x6xbf16>, vector<6x400xbf16>, vector<32x400xf32> -> vector<32x400xf32>
    %6 = arith.addf %2, %5 : vector<32x400xf32>
    %c0_8 = arith.constant 0 : index
    %c0_9 = arith.constant 0 : index
    %7 = vector.load %arg5[%c0_8, %c0_9] : memref<1x400xf32, #tpu.memory_space<vmem>>, vector<1x400xf32>
    %8 = vector.broadcast %7 : vector<1x400xf32> to vector<32x400xf32>
    %9 = arith.addf %6, %8 : vector<32x400xf32>
    %cst_10 = arith.constant dense<0.000000e+00> : vector<32xf32>
    %10 = vector.multi_reduction <add>, %9, %cst_10 [1] : vector<32x400xf32> to vector<32xf32>
    %11 = vector.shape_cast %10 : vector<32xf32> to vector<32x1xf32>
    %cst_11 = arith.constant 4.000000e+02 : f32
    %12 = vector.broadcast %cst_11 : f32 to vector<32x1xf32>
    %13 = arith.divf %11, %12 : vector<32x1xf32>
    %14 = vector.broadcast %13 : vector<32x1xf32> to vector<32x400xf32>
    %15 = arith.subf %9, %14 : vector<32x400xf32>
    %16 = arith.mulf %15, %15 : vector<32x400xf32>
    %cst_12 = arith.constant dense<0.000000e+00> : vector<32xf32>
    %17 = vector.multi_reduction <add>, %16, %cst_12 [1] : vector<32x400xf32> to vector<32xf32>
    %18 = vector.shape_cast %17 : vector<32xf32> to vector<32x1xf32>
    %cst_13 = arith.constant 4.000000e+02 : f32
    %19 = vector.broadcast %cst_13 : f32 to vector<32x1xf32>
    %20 = arith.divf %18, %19 : vector<32x1xf32>
    %cst_14 = arith.constant 9.99999974E-6 : f32
    %21 = vector.broadcast %cst_14 : f32 to vector<32x1xf32>
    %22 = arith.addf %20, %21 : vector<32x1xf32>
    %23 = math.rsqrt %22 : vector<32x1xf32>
    %24 = vector.broadcast %23 : vector<32x1xf32> to vector<32x400xf32>
    %25 = arith.mulf %15, %24 : vector<32x400xf32>
    %c0_15 = arith.constant 0 : index
    %c0_16 = arith.constant 0 : index
    %26 = vector.load %arg6[%c0_15, %c0_16] : memref<1x400xf32, #tpu.memory_space<vmem>>, vector<1x400xf32>
    %27 = vector.broadcast %26 : vector<1x400xf32> to vector<32x400xf32>
    %28 = arith.mulf %25, %27 : vector<32x400xf32>
    %c0_17 = arith.constant 0 : index
    %c0_18 = arith.constant 0 : index
    %29 = vector.load %arg7[%c0_17, %c0_18] : memref<1x400xf32, #tpu.memory_space<vmem>>, vector<1x400xf32>
    %30 = vector.broadcast %29 : vector<1x400xf32> to vector<32x400xf32>
    %31 = arith.addf %28, %30 : vector<32x400xf32>
    %32 = arith.truncf %31 : vector<32x400xf32> to vector<32x400xbf16>
    %cst_19 = arith.constant 0.000000e+00 : bf16
    %33 = vector.broadcast %cst_19 : bf16 to vector<32x400xbf16>
    %34 = arith.maximumf %32, %33 : vector<32x400xbf16>
    %c0_20 = arith.constant 0 : index
    %c0_21 = arith.constant 0 : index
    %35 = vector.load %arg8[%c0_20, %c0_21] : memref<400x300xbf16, #tpu.memory_space<vmem>>, vector<400x300xbf16>
    %cst_22 = arith.constant dense<0.000000e+00> : vector<32x300xf32>
    %36 = tpu.matmul %34, %35, %cst_22 {dimension_numbers = #tpu.dot_dimension_numbers<[1], [0], [0], [1], [0, 0, 1, 1], [], []>} : vector<32x400xbf16>, vector<400x300xbf16>, vector<32x300xf32> -> vector<32x300xf32>
    %c0_23 = arith.constant 0 : index
    %c0_24 = arith.constant 0 : index
    %37 = vector.load %arg9[%c0_23, %c0_24] : memref<1x300xf32, #tpu.memory_space<vmem>>, vector<1x300xf32>
    %38 = vector.broadcast %37 : vector<1x300xf32> to vector<32x300xf32>
    %39 = arith.addf %36, %38 : vector<32x300xf32>
    %cst_25 = arith.constant 0.000000e+00 : f32
    %40 = vector.broadcast %cst_25 : f32 to vector<32x300xf32>
    %41 = arith.maximumf %39, %40 : vector<32x300xf32>
    %c0_26 = arith.constant 0 : index
    %c0_27 = arith.constant 0 : index
    %42 = vector.load %arg10[%c0_26, %c0_27] : memref<1x300xf32, #tpu.memory_space<vmem>>, vector<1x300xf32>
    %43 = vector.broadcast %42 : vector<1x300xf32> to vector<32x300xf32>
    %44 = arith.mulf %41, %43 : vector<32x300xf32>
    %cst_28 = arith.constant dense<0.000000e+00> : vector<32xf32>
    %45 = vector.multi_reduction <add>, %44, %cst_28 [1] : vector<32x300xf32> to vector<32xf32>
    %46 = vector.shape_cast %45 : vector<32xf32> to vector<1x32xf32>
    %c0_29 = arith.constant 0 : index
    %c0_30 = arith.constant 0 : index
    %47 = vector.load %arg11[%c0_29, %c0_30] : memref<1x1xf32, #tpu.memory_space<vmem>>, vector<1x1xf32>
    %48 = vector.broadcast %47 : vector<1x1xf32> to vector<1x32xf32>
    %49 = arith.addf %46, %48 : vector<1x32xf32>
    %c0_31 = arith.constant 0 : index
    %c0_32 = arith.constant 0 : index
    %50 = vector.load %arg12[%c0_31, %c0_32] : memref<1x32xf32, #tpu.memory_space<vmem>>, vector<1x32xf32>
    tpu.vector_store %arg12[%c0_31, %c0_32], %49 {strides = array<i32>} : memref<1x32xf32, #tpu.memory_space<vmem>>, vector<1x32xf32>,
    return
  }
  func.func @transform_0(%arg0: i32) -> (i32, i32) {
    %c0_i32 = arith.constant 0 : i32
    %c0_i32_0 = arith.constant 0 : i32
    return %arg0, %c0_i32 : i32, i32
  }
  func.func @transform_1(%arg0: i32) -> (i32, i32) {
    %c0_i32 = arith.constant 0 : i32
    %c0_i32_0 = arith.constant 0 : i32
    return %arg0, %c0_i32 : i32, i32
  }
  func.func @transform_2(%arg0: i32) -> (i32, i32) {
    %c0_i32 = arith.constant 0 : i32
    %c0_i32_0 = arith.constant 0 : i32
    %c0_i32_1 = arith.constant 0 : i32
    return %c0_i32, %c0_i32_0 : i32, i32
  }
  func.func @transform_3(%arg0: i32) -> (i32, i32) {
    %c0_i32 = arith.constant 0 : i32
    %c0_i32_0 = arith.constant 0 : i32
    %c0_i32_1 = arith.constant 0 : i32
    return %c0_i32, %c0_i32_0 : i32, i32
  }
  func.func @transform_4(%arg0: i32) -> (i32, i32) {
    %c0_i32 = arith.constant 0 : i32
    %c0_i32_0 = arith.constant 0 : i32
    %c0_i32_1 = arith.constant 0 : i32
    return %c0_i32, %c0_i32_0 : i32, i32
  }
  func.func @transform_5(%arg0: i32) -> (i32, i32) {
    %c0_i32 = arith.constant 0 : i32
    %c0_i32_0 = arith.constant 0 : i32
    %c0_i32_1 = arith.constant 0 : i32
    return %c0_i32, %c0_i32_0 : i32, i32
  }
  func.func @transform_6(%arg0: i32) -> (i32, i32) {
    %c0_i32 = arith.constant 0 : i32
    %c0_i32_0 = arith.constant 0 : i32
    %c0_i32_1 = arith.constant 0 : i32
    return %c0_i32, %c0_i32_0 : i32, i32
  }
  func.func @transform_7(%arg0: i32) -> (i32, i32) {
    %c0_i32 = arith.constant 0 : i32
    %c0_i32_0 = arith.constant 0 : i32
    %c0_i32_1 = arith.constant 0 : i32
    return %c0_i32, %c0_i32_0 : i32, i32
  }
  func.func @transform_8(%arg0: i32) -> (i32, i32) {
    %c0_i32 = arith.constant 0 : i32
    %c0_i32_0 = arith.constant 0 : i32
    %c0_i32_1 = arith.constant 0 : i32
    return %c0_i32, %c0_i32_0 : i32, i32
  }
  func.func @transform_9(%arg0: i32) -> (i32, i32) {
    %c0_i32 = arith.constant 0 : i32
    %c0_i32_0 = arith.constant 0 : i32
    %c0_i32_1 = arith.constant 0 : i32
    return %c0_i32, %c0_i32_0 : i32, i32
  }
  func.func @transform_10(%arg0: i32) -> (i32, i32) {
    %c0_i32 = arith.constant 0 : i32
    %c0_i32_0 = arith.constant 0 : i32
    %c0_i32_1 = arith.constant 0 : i32
    return %c0_i32, %c0_i32_0 : i32, i32
  }
  func.func @transform_11(%arg0: i32) -> (i32, i32) {
    %c0_i32 = arith.constant 0 : i32
    %c0_i32_0 = arith.constant 0 : i32
    return %c0_i32, %arg0 : i32, i32
  }
}

</mosaic_0001>

<llo_original>
// kernel: tpu_custom_call.1
$region0: #{tpu_custom_call.1}
  #allocation0 [shape = 'u32[]', space=smem, size = 0x4, offset = 0x4, fixed_abs, tag = 'smem constant byte address 0x4 - core index']
  #allocation1 [shape = 'u32[144,128]{1,0:T(1,128)}', space=vmem, size = 0x12000, scoped, tag = 'internal scratch']
  #allocation2 [shape = 'f32[1,1]{1,0:T(1,128)S(1)}', space=vmem, size = 0x200, scoped, tag = 'scoped memory for tpu_custom_call.1']
  %s0 = inlined_call_operand.vmem [shape: bf16[32,17], index: 0, kind: input, shape index: {}]
  %s1 = inlined_call_operand.vmem [shape: bf16[32,6], index: 1, kind: input, shape index: {}]
  %s2 = inlined_call_operand.vmem [shape: bf16[17,400], index: 2, kind: input, shape index: {}]
  %s3 = inlined_call_operand.hbm [shape: bf16[6,400], index: 3, kind: input, shape index: {}]
  %s4 = inlined_call_operand.vmem [shape: f32[1,400], index: 4, kind: input, shape index: {}]
  %s5 = inlined_call_operand.vmem [shape: f32[1,400], index: 5, kind: input, shape index: {}]
  %s6 = inlined_call_operand.vmem [shape: f32[1,400], index: 6, kind: input, shape index: {}]
  %s7 = inlined_call_operand.hbm [shape: bf16[400,300], index: 7, kind: input, shape index: {}]
  %s8 = inlined_call_operand.vmem [shape: f32[1,300], index: 8, kind: input, shape index: {}]
  %s9 = inlined_call_operand.vmem [shape: f32[1,300], index: 9, kind: input, shape index: {}]
  %s10 = inlined_call_operand.<no memory space> [shape: f32[1,1], index: 10, kind: input, shape index: {}]
  %s11 = inlined_call_operand.hbm [shape: f32[1,32], index: 11, kind: output, shape index: {}]
  %s12 = sld [smem:[#allocation0]]
  $region62: #{tpu_custom_call.1} parent=0
    _
  %s14 = ssub.s32 1, %s12
  %s15 = scalar_select 0, %s14, %s12
  %v16 = vstv %s10
  %17 = vst [vmem:[#allocation2] sm:$0x1] %v16
  $region1: #{tpu_custom_call.1} parent=0
    #allocation3 [shape = 'u8[8192]{0}', space=vmem, size = 0x2000, scoped, tag = 'input window, operand 3, single buffered']
    #allocation4 [shape = 's32[1]{0}', space=sflag, size = 0x4, scoped, tag = 'scoped memory for tpu_custom_call.1']
    #allocation5 [shape = 's32[1]{0}', space=sflag, size = 0x4, scoped, tag = 'scoped memory for tpu_custom_call.1']
    #allocation6 [shape = 'u8[307200]{0}', space=vmem, size = 0x4b000, scoped, tag = 'input window, operand 7, single buffered']
    #allocation7 [shape = 's32[1]{0}', space=sflag, size = 0x4, scoped, tag = 'scoped memory for tpu_custom_call.1']
    #allocation8 [shape = 'u8[512]{0}', space=vmem, size = 0x400, scoped, tag = 'output window, operand 0, single buffered']
    %18 = vsyncpa [#allocation4], 0
    %19 = vsyncpa [#allocation7], 0
    %20 = vsyncpa [#allocation5], 0
    // Predicated region
    $region2: #{tpu_custom_call.1} parent=1 // pred_check
      _
    $region3: #{tpu_custom_call.1} parent=1 // pred_check_branch
      %22 = sbr.rel (0) target = $region5
    $region4: #{tpu_custom_call.1} parent=1 // pred_region
      _
    $region5: #{tpu_custom_call.1} parent=1 // pred_fallthru
      _
    // Predicated region
    $region6: #{tpu_custom_call.1} parent=1 // pred_check
      _
    $region7: #{tpu_custom_call.1} parent=1 // pred_check_branch
      %24 = sbr.rel (0) target = $region9
    $region8: #{tpu_custom_call.1} parent=1 // pred_region
      _
    $region9: #{tpu_custom_call.1} parent=1 // pred_fallthru
      _
    // Predicated region
    $region10: #{tpu_custom_call.1} parent=1 // pred_check
      _
    $region11: #{tpu_custom_call.1} parent=1 // pred_check_branch
      %26 = sbr.rel (0) target = $region13
    $region12: #{tpu_custom_call.1} parent=1 // pred_region
      _
    $region13: #{tpu_custom_call.1} parent=1 // pred_fallthru
      _
    // Predicated region
    $region14: #{tpu_custom_call.1} parent=1 // pred_check
      _
    $region15: #{tpu_custom_call.1} parent=1 // pred_check_branch
      %28 = sbr.rel (0) target = $region17
    $region16: #{tpu_custom_call.1} parent=1 // pred_region
      %s30 = ssub.s32 256, 256
      %31 = vsyncadd [#allocation4], %s30
      %s33 = sshll.u32 [#allocation3], 4
      %s34 = int_to_ptr.vmem [resolvable:$true] %s33
      %36 = dma.hbm_to_vmem [thread:$0]  %s3, 256, %s34, [#allocation4]
    $region17: #{tpu_custom_call.1} parent=1 // pred_fallthru
      _
    // Predicated region
    $region18: #{tpu_custom_call.1} parent=1 // pred_check
      _
    $region19: #{tpu_custom_call.1} parent=1 // pred_check_branch
      %38 = sbr.rel (0) target = $region21
    $region20: #{tpu_custom_call.1} parent=1 // pred_region
      _
    $region21: #{tpu_custom_call.1} parent=1 // pred_fallthru
      _
    // Predicated region
    $region22: #{tpu_custom_call.1} parent=1 // pred_check
      _
    $region23: #{tpu_custom_call.1} parent=1 // pred_check_branch
      %40 = sbr.rel (0) target = $region25
    $region24: #{tpu_custom_call.1} parent=1 // pred_region
      _
    $region25: #{tpu_custom_call.1} parent=1 // pred_fallthru
      _
    // Predicated region
    $region26: #{tpu_custom_call.1} parent=1 // pred_check
      _
    $region27: #{tpu_custom_call.1} parent=1 // pred_check_branch
      %42 = sbr.rel (0) target = $region29
    $region28: #{tpu_custom_call.1} parent=1 // pred_region
      _
    $region29: #{tpu_custom_call.1} parent=1 // pred_fallthru
      _
    // Predicated region
    $region30: #{tpu_custom_call.1} parent=1 // pred_check
      _
    $region31: #{tpu_custom_call.1} parent=1 // pred_check_branch
      %44 = sbr.rel (0) target = $region33
    $region32: #{tpu_custom_call.1} parent=1 // pred_region
      %s46 = ssub.s32 9600, 9600
      %47 = vsyncadd [#allocation7], %s46
      %s48 = sshll.u32 [#allocation6], 4
      %s49 = int_to_ptr.vmem [resolvable:$true] %s48
      %54 = dma.hbm_to_vmem [thread:$0]  %s7, 9600, %s49, [#allocation7], 192, 192, 12
    $region33: #{tpu_custom_call.1} parent=1 // pred_fallthru
      _
    // Predicated region
    $region34: #{tpu_custom_call.1} parent=1 // pred_check
      _
    $region35: #{tpu_custom_call.1} parent=1 // pred_check_branch
      %56 = sbr.rel (0) target = $region37
    $region36: #{tpu_custom_call.1} parent=1 // pred_region
      _
    $region37: #{tpu_custom_call.1} parent=1 // pred_fallthru
      _
    // Predicated region
    $region38: #{tpu_custom_call.1} parent=1 // pred_check
      _
    $region39: #{tpu_custom_call.1} parent=1 // pred_check_branch
      %58 = sbr.rel (0) target = $region41
    $region40: #{tpu_custom_call.1} parent=1 // pred_region
      _
    $region41: #{tpu_custom_call.1} parent=1 // pred_fallthru
      _
    // Predicated region
    $region42: #{tpu_custom_call.1} parent=1 // pred_check
      _
    $region43: #{tpu_custom_call.1} parent=1 // pred_check_branch
      %60 = sbr.rel (0) target = $region45
    $region44: #{tpu_custom_call.1} parent=1 // pred_region
      _
    $region45: #{tpu_custom_call.1} parent=1 // pred_fallthru
      _
    // Predicated region
    $region46: #{tpu_custom_call.1} parent=1 // pred_check
      _
    $region47: #{tpu_custom_call.1} parent=1 // pred_check_branch
      %62 = sbr.rel (0) target = $region49
    $region48: #{tpu_custom_call.1} parent=1 // pred_region
      %63 = dma.done [#allocation4], 256
    $region49: #{tpu_custom_call.1} parent=1 // pred_fallthru
      _
    // Predicated region
    $region50: #{tpu_custom_call.1} parent=1 // pred_check
      _
    $region51: #{tpu_custom_call.1} parent=1 // pred_check_branch
      %65 = sbr.rel (0) target = $region53
    $region52: #{tpu_custom_call.1} parent=1 // pred_region
      %66 = dma.done [#allocation7], 9600
    $region53: #{tpu_custom_call.1} parent=1 // pred_fallthru
      _
    %v68 = vld [vmem:[%s0] sm:$0xf]
    %v69 = vld [vmem:[%s0 + $0x4] sm:$0xf]
    %v70 = vld [vmem:[%s0 + $0x8] sm:$0xf]
    %v71 = vld [vmem:[%s0 + $0xc] sm:$0xf]
    %v72 = vld [vmem:[%s2] sm:$0xff]
    %v73 = vld [vmem:[%s2 + $0x8] sm:$0xff]
    %v74 = vld [vmem:[%s2 + $0x10] sm:$0xff]
    %v75 = vld [vmem:[%s2 + $0x18] sm:$0xff]
    %v76 = vld [vmem:[%s2 + $0x20] sm:$0x11]
    %v77 = vld [vmem:[%s2 + $0x28] sm:$0x11]
    %v78 = vld [vmem:[%s1] sm:$0xf]
    %v79 = vld [vmem:[%s1 + $0x4] sm:$0xf]
    %v80 = vld [vmem:[%s1 + $0x8] sm:$0xf]
    %v81 = vld [vmem:[%s1 + $0xc] sm:$0xf]
    %v82 = vld [vmem:[#allocation3] sm:$0x77]
    %v83 = vld [vmem:[#allocation3 + $0x8] sm:$0x77]
    %v88 = vunpack.c.l.b16 %v78
    %v89 = vunpack.c.l.b16 %v79
    %v90 = vunpack.c.l.b16 %v80
    %v91 = vunpack.c.l.b16 %v81
    %v92 = vpack.c.b16 %v89, %v88
    %v93 = vpack.c.b16 %v91, %v90
    %v96 = vunpack.c.l.b16 %v82
    %v97 = vunpack.c.h.b16 %v82
    %v98 = vunpack.c.l.b16 %v83
    %v99 = vunpack.c.h.b16 %v83
    %v100 = vpack.c.b16 %v96, %v96
    %v101 = vpack.c.b16 %v97, %v97
    %v102 = vpack.c.b16 %v98, %v98
    %v103 = vpack.c.b16 %v99, %v99
    %vm104 = vcmask 48128
    %v106 = vsel %vm104, %v92, 0
    %v109 = vsel %vm104, %v93, 0
    %vm111 = vcmask 1042432
    %v113 = vsel %vm111, %v100, 0
    %v116 = vsel %vm111, %v101, 0
    %v119 = vsel %vm111, %v102, 0
    %v122 = vsel %vm111, %v103, 0
    %124 = vmatprep.subr.bf16.mxu0 %v116
    %125 = vmatpush1.bf16.msra.mxu0 %v113
    %126 = vmatprep.subr.bf16.mxu0 0
    %127 = vmatpush1.bf16.msra.mxu0 0
    %128 = vmatprep.subr.bf16.mxu0 0
    %129 = vmatpush1.bf16.msra.mxu0 0
    %130 = vmatprep.subr.bf16.mxu0 0
    %131 = vmatpush1.bf16.msra.mxu0 0
    %132 = vmatprep.subr.bf16.mxu0 0
    %133 = vmatpush1.bf16.msra.mxu0 0
    %134 = vmatprep.subr.bf16.mxu0 0
    %135 = vmatpush1.bf16.msra.mxu0 0
    %136 = vmatprep.subr.bf16.mxu0 0
    %137 = vmatpush1.bf16.msra.mxu0 0
    %138 = vmatprep.subr.bf16.mxu0 0
    %139 = vmatpush1.bf16.msra.mxu0 0
    %140 = vmatprep.subr.bf16.mxu0 0
    %141 = vmatpush1.bf16.msra.mxu0 0
    %142 = vmatprep.subr.bf16.mxu0 0
    %143 = vmatpush1.bf16.msra.mxu0 0
    %144 = vmatprep.subr.bf16.mxu0 0
    %145 = vmatpush1.bf16.msra.mxu0 0
    %146 = vmatprep.subr.bf16.mxu0 0
    %147 = vmatpush1.bf16.msra.mxu0 0
    %148 = vmatprep.subr.bf16.mxu0 0
    %149 = vmatpush1.bf16.msra.mxu0 0
    %150 = vmatprep.subr.bf16.mxu0 0
    %151 = vmatpush1.bf16.msra.mxu0 0
    %152 = vmatprep.subr.bf16.mxu0 0
    %153 = vmatpush1.bf16.msra.mxu0 0
    %154 = vmatprep.subr.bf16.mxu0 0
    %155 = vmatpush1.bf16.msra.mxu0 0
    %156 = vmatprep.mubr.bf16.mxu0 0
    %157 = vmatmul.mubr.bf16.gmra.mrb[0].mxu0 %v106
    %v158 = vpop.f32.mrb[0].mxu0
    %v159 = vadd.f32 0.0, %v158
    %v160 = vpop.f32.mrb[0].mxu0
    %v161 = vadd.f32 0.0, %v160
    %v162 = vpop.f32.mrb[0].mxu0
    %v163 = vadd.f32 0.0, %v162
    %v164 = vpop.f32.mrb[0].mxu0
    %v165 = vadd.f32 0.0, %v164
    %166 = vmatprep.mubr.bf16.mxu0 0
    %167 = vmatmul.mubr.bf16.gmra.mrb[0].mxu0 %v109
    %v168 = vpop.f32.mrb[0].mxu0
    %v169 = vadd.f32 0.0, %v168
    %v170 = vpop.f32.mrb[0].mxu0
    %v171 = vadd.f32 0.0, %v170
    %v172 = vpop.f32.mrb[0].mxu0
    %v173 = vadd.f32 0.0, %v172
    %v174 = vpop.f32.mrb[0].mxu0
    %v175 = vadd.f32 0.0, %v174
    %176 = vdwg.mxu0
    %177 = vmatprep.subr.bf16.mxu0 %v122
    %178 = vmatpush1.bf16.msra.mxu0 %v119
    %179 = vmatprep.subr.bf16.mxu0 0
    %180 = vmatpush1.bf16.msra.mxu0 0
    %181 = vmatprep.subr.bf16.mxu0 0
    %182 = vmatpush1.bf16.msra.mxu0 0
    %183 = vmatprep.subr.bf16.mxu0 0
    %184 = vmatpush1.bf16.msra.mxu0 0
    %185 = vmatprep.subr.bf16.mxu0 0
    %186 = vmatpush1.bf16.msra.mxu0 0
    %187 = vmatprep.subr.bf16.mxu0 0
    %188 = vmatpush1.bf16.msra.mxu0 0
    %189 = vmatprep.subr.bf16.mxu0 0
    %190 = vmatpush1.bf16.msra.mxu0 0
    %191 = vmatprep.subr.bf16.mxu0 0
    %192 = vmatpush1.bf16.msra.mxu0 0
    %193 = vmatprep.subr.bf16.mxu0 0
    %194 = vmatpush1.bf16.msra.mxu0 0
    %195 = vmatprep.subr.bf16.mxu0 0
    %196 = vmatpush1.bf16.msra.mxu0 0
    %197 = vmatprep.subr.bf16.mxu0 0
    %198 = vmatpush1.bf16.msra.mxu0 0
    %199 = vmatprep.subr.bf16.mxu0 0
    %200 = vmatpush1.bf16.msra.mxu0 0
    %201 = vmatprep.subr.bf16.mxu0 0
    %202 = vmatpush1.bf16.msra.mxu0 0
    %203 = vmatprep.subr.bf16.mxu0 0
    %204 = vmatpush1.bf16.msra.mxu0 0
    %205 = vmatprep.subr.bf16.mxu0 0
    %206 = vmatpush1.bf16.msra.mxu0 0
    %207 = vmatprep.subr.bf16.mxu0 0
    %208 = vmatpush1.bf16.msra.mxu0 0
    %209 = vmatprep.mubr.bf16.mxu0 0
    %210 = vmatmul.mubr.bf16.gmra.mrb[0].mxu0 %v106
    %v211 = vpop.f32.mrb[0].mxu0
    %v212 = vadd.f32 0.0, %v211
    %v213 = vpop.f32.mrb[0].mxu0
    %v214 = vadd.f32 0.0, %v213
    %v215 = vpop.f32.mrb[0].mxu0
    %v216 = vadd.f32 0.0, %v215
    %v217 = vpop.f32.mrb[0].mxu0
    %v218 = vadd.f32 0.0, %v217
    %219 = vmatprep.mubr.bf16.mxu0 0
    %220 = vmatmul.mubr.bf16.gmra.mrb[0].mxu0 %v109
    %v221 = vpop.f32.mrb[0].mxu0
    %v222 = vadd.f32 0.0, %v221
    %v223 = vpop.f32.mrb[0].mxu0
    %v224 = vadd.f32 0.0, %v223
    %v225 = vpop.f32.mrb[0].mxu0
    %v226 = vadd.f32 0.0, %v225
    %v227 = vpop.f32.mrb[0].mxu0
    %v228 = vadd.f32 0.0, %v227
    %229 = vdwg.mxu0
    %v234 = vunpack.c.l.b16 %v68
    %v235 = vunpack.c.l.b16 %v69
    %v236 = vunpack.c.l.b16 %v70
    %v237 = vunpack.c.l.b16 %v71
    %v238 = vpack.c.b16 %v235, %v234
    %v239 = vpack.c.b16 %v237, %v236
    %v246 = vunpack.c.l.b16 %v72
    %v247 = vunpack.c.h.b16 %v72
    %v248 = vunpack.c.l.b16 %v73
    %v249 = vunpack.c.h.b16 %v73
    %v250 = vunpack.c.l.b16 %v74
    %v251 = vunpack.c.h.b16 %v74
    %v252 = vunpack.c.l.b16 %v75
    %v253 = vunpack.c.h.b16 %v75
    %v254 = vunpack.c.l.b16 %v76
    %v255 = vunpack.c.h.b16 %v76
    %v256 = vunpack.c.l.b16 %v77
    %v257 = vunpack.c.h.b16 %v77
    %v258 = vpack.c.b16 %v250, %v246
    %v259 = vpack.c.b16 %v251, %v247
    %v260 = vpack.c.b16 %v252, %v248
    %v261 = vpack.c.b16 %v253, %v249
    %v262 = vpack.c.b16 %v254, %v254
    %v263 = vpack.c.b16 %v255, %v255
    %v264 = vpack.c.b16 %v256, %v256
    %v265 = vpack.c.b16 %v257, %v257
    %vm270 = vcmask 138240
    %v272 = vsel %vm270, %v238, 0
    %v275 = vsel %vm270, %v239, 0
    %vm277 = vcmask 1040384
    %v278 = vsel 0, 4294967295, 65535
    %v279 = vsel %vm277, %v278, 0
    %v281 = vand.u32 %v262, %v279
    %v284 = vand.u32 %v263, %v279
    %v287 = vand.u32 %v264, %v279
    %v290 = vand.u32 %v265, %v279
    %292 = vmatprep.subr.bf16.mxu0 %v259
    %293 = vmatpush1.bf16.msra.mxu0 %v258
    %294 = vmatprep.subr.bf16.mxu0 %v284
    %295 = vmatpush1.bf16.msra.mxu0 %v281
    %296 = vmatprep.subr.bf16.mxu0 0
    %297 = vmatpush1.bf16.msra.mxu0 0
    %298 = vmatprep.subr.bf16.mxu0 0
    %299 = vmatpush1.bf16.msra.mxu0 0
    %300 = vmatprep.subr.bf16.mxu0 0
    %301 = vmatpush1.bf16.msra.mxu0 0
    %302 = vmatprep.subr.bf16.mxu0 0
    %303 = vmatpush1.bf16.msra.mxu0 0
    %304 = vmatprep.subr.bf16.mxu0 0
    %305 = vmatpush1.bf16.msra.mxu0 0
    %306 = vmatprep.subr.bf16.mxu0 0
    %307 = vmatpush1.bf16.msra.mxu0 0
    %308 = vmatprep.subr.bf16.mxu0 0
    %309 = vmatpush1.bf16.msra.mxu0 0
    %310 = vmatprep.subr.bf16.mxu0 0
    %311 = vmatpush1.bf16.msra.mxu0 0
    %312 = vmatprep.subr.bf16.mxu0 0
    %313 = vmatpush1.bf16.msra.mxu0 0
    %314 = vmatprep.subr.bf16.mxu0 0
    %315 = vmatpush1.bf16.msra.mxu0 0
    %316 = vmatprep.subr.bf16.mxu0 0
    %317 = vmatpush1.bf16.msra.mxu0 0
    %318 = vmatprep.subr.bf16.mxu0 0
    %319 = vmatpush1.bf16.msra.mxu0 0
    %320 = vmatprep.subr.bf16.mxu0 0
    %321 = vmatpush1.bf16.msra.mxu0 0
    %322 = vmatprep.subr.bf16.mxu0 0
    %323 = vmatpush1.bf16.msra.mxu0 0
    %324 = vmatprep.mubr.bf16.mxu0 0
    %325 = vmatmul.mubr.bf16.gmra.mrb[0].mxu0 %v272
    %v326 = vpop.f32.mrb[0].mxu0
    %v327 = vadd.f32 %v159, %v326
    %v328 = vpop.f32.mrb[0].mxu0
    %v329 = vadd.f32 %v161, %v328
    %v330 = vpop.f32.mrb[0].mxu0
    %v331 = vadd.f32 %v163, %v330
    %v332 = vpop.f32.mrb[0].mxu0
    %v333 = vadd.f32 %v165, %v332
    %334 = vmatprep.mubr.bf16.mxu0 0
    %335 = vmatmul.mubr.bf16.gmra.mrb[0].mxu0 %v275
    %v336 = vpop.f32.mrb[0].mxu0
    %v337 = vadd.f32 %v169, %v336
    %v338 = vpop.f32.mrb[0].mxu0
    %v339 = vadd.f32 %v171, %v338
    %v340 = vpop.f32.mrb[0].mxu0
    %v341 = vadd.f32 %v173, %v340
    %v342 = vpop.f32.mrb[0].mxu0
    %v343 = vadd.f32 %v175, %v342
    %344 = vdwg.mxu0
    %345 = vmatprep.subr.bf16.mxu0 %v261
    %346 = vmatpush1.bf16.msra.mxu0 %v260
    %347 = vmatprep.subr.bf16.mxu0 %v290
    %348 = vmatpush1.bf16.msra.mxu0 %v287
    %349 = vmatprep.subr.bf16.mxu0 0
    %350 = vmatpush1.bf16.msra.mxu0 0
    %351 = vmatprep.subr.bf16.mxu0 0
    %352 = vmatpush1.bf16.msra.mxu0 0
    %353 = vmatprep.subr.bf16.mxu0 0
    %354 = vmatpush1.bf16.msra.mxu0 0
    %355 = vmatprep.subr.bf16.mxu0 0
    %356 = vmatpush1.bf16.msra.mxu0 0
    %357 = vmatprep.subr.bf16.mxu0 0
    %358 = vmatpush1.bf16.msra.mxu0 0
    %359 = vmatprep.subr.bf16.mxu0 0
    %360 = vmatpush1.bf16.msra.mxu0 0
    %361 = vmatprep.subr.bf16.mxu0 0
    %362 = vmatpush1.bf16.msra.mxu0 0
    %363 = vmatprep.subr.bf16.mxu0 0
    %364 = vmatpush1.bf16.msra.mxu0 0
    %365 = vmatprep.subr.bf16.mxu0 0
    %366 = vmatpush1.bf16.msra.mxu0 0
    %367 = vmatprep.subr.bf16.mxu0 0
    %368 = vmatpush1.bf16.msra.mxu0 0
    %369 = vmatprep.subr.bf16.mxu0 0
    %370 = vmatpush1.bf16.msra.mxu0 0
    %371 = vmatprep.subr.bf16.mxu0 0
    %372 = vmatpush1.bf16.msra.mxu0 0
    %373 = vmatprep.subr.bf16.mxu0 0
    %374 = vmatpush1.bf16.msra.mxu0 0
    %375 = vmatprep.subr.bf16.mxu0 0
    %376 = vmatpush1.bf16.msra.mxu0 0
    %377 = vmatprep.mubr.bf16.mxu0 0
    %378 = vmatmul.mubr.bf16.gmra.mrb[0].mxu0 %v272
    %v379 = vpop.f32.mrb[0].mxu0
    %v380 = vadd.f32 %v212, %v379
    %v381 = vpop.f32.mrb[0].mxu0
    %v382 = vadd.f32 %v214, %v381
    %v383 = vpop.f32.mrb[0].mxu0
    %v384 = vadd.f32 %v216, %v383
    %v385 = vpop.f32.mrb[0].mxu0
    %v386 = vadd.f32 %v218, %v385
    %387 = vmatprep.mubr.bf16.mxu0 0
    %388 = vmatmul.mubr.bf16.gmra.mrb[0].mxu0 %v275
    %v389 = vpop.f32.mrb[0].mxu0
    %v390 = vadd.f32 %v222, %v389
    %v391 = vpop.f32.mrb[0].mxu0
    %v392 = vadd.f32 %v224, %v391
    %v393 = vpop.f32.mrb[0].mxu0
    %v394 = vadd.f32 %v226, %v393
    %v395 = vpop.f32.mrb[0].mxu0
    %v396 = vadd.f32 %v228, %v395
    %397 = vdwg.mxu0
    %v398 = vld [vmem:[%s4] sm:$0xf]
    %v400 = vlaneseq
    %v401 = vshrl.u32 %v400, 7
    %v402 = vsub.s32 0, %v401
    %v403 = vrot.slane %v398, %v402
    %v404 = vlaneseq
    %v405 = vshrl.u32 %v404, 7
    %v406 = vsub.s32 1, %v405
    %v407 = vrot.slane %v398, %v406
    %v408 = vlaneseq
    %v409 = vshrl.u32 %v408, 7
    %v410 = vsub.s32 2, %v409
    %v411 = vrot.slane %v398, %v410
    %v412 = vlaneseq
    %v413 = vshrl.u32 %v412, 7
    %v414 = vsub.s32 3, %v413
    %v415 = vrot.slane %v398, %v414
    %v420 = vadd.f32 %v327, %v403
    %v421 = vadd.f32 %v329, %v407
    %v422 = vadd.f32 %v380, %v411
    %v423 = vadd.f32 %v382, %v415
    %v424 = vadd.f32 %v331, %v403
    %v425 = vadd.f32 %v333, %v407
    %v426 = vadd.f32 %v384, %v411
    %v427 = vadd.f32 %v386, %v415
    %v428 = vadd.f32 %v337, %v403
    %v429 = vadd.f32 %v339, %v407
    %v430 = vadd.f32 %v390, %v411
    %v431 = vadd.f32 %v392, %v415
    %v432 = vadd.f32 %v341, %v403
    %v433 = vadd.f32 %v343, %v407
    %v434 = vadd.f32 %v394, %v411
    %v435 = vadd.f32 %v396, %v415
    %v436 = vadd.f32 %v420, %v421
    %v437 = vadd.f32 %v436, %v422
    %vm438 = vcmask 130048
    %v439 = vsel %vm438, %v423, 0.0
    %v440 = vadd.f32 %v437, %v439
    %441 = vadd.xlane.f32.xlu0 %v440
    %v442 = vpop.xlane.xlu0 %441
    %v443 = vadd.f32 %v424, %v425
    %v444 = vadd.f32 %v443, %v426
    %v445 = vsel %vm438, %v427, 0.0
    %v446 = vadd.f32 %v444, %v445
    %447 = vadd.xlane.f32.xlu0 %v446
    %v448 = vpop.xlane.xlu0 %447
    %v449 = vadd.f32 %v428, %v429
    %v450 = vadd.f32 %v449, %v430
    %v451 = vsel %vm438, %v431, 0.0
    %v452 = vadd.f32 %v450, %v451
    %453 = vadd.xlane.f32.xlu0 %v452
    %v454 = vpop.xlane.xlu0 %453
    %v455 = vadd.f32 %v432, %v433
    %v456 = vadd.f32 %v455, %v434
    %v457 = vsel %vm438, %v435, 0.0
    %v458 = vadd.f32 %v456, %v457
    %459 = vadd.xlane.f32.xlu0 %v458
    %v460 = vpop.xlane.xlu0 %459
    %v461 = vrcp.pop 400.0
    %v462 = vmul.f32 %v442, %v461
    %v463 = vmul.f32 %v448, %v461
    %v464 = vmul.f32 %v454, %v461
    %v465 = vmul.f32 %v460, %v461
    %v466 = vsub.f32 %v420, %v462
    %v467 = vsub.f32 %v421, %v462
    %v468 = vsub.f32 %v422, %v462
    %v469 = vsub.f32 %v423, %v462
    %v470 = vsub.f32 %v424, %v463
    %v471 = vsub.f32 %v425, %v463
    %v472 = vsub.f32 %v426, %v463
    %v473 = vsub.f32 %v427, %v463
    %v474 = vsub.f32 %v428, %v464
    %v475 = vsub.f32 %v429, %v464
    %v476 = vsub.f32 %v430, %v464
    %v477 = vsub.f32 %v431, %v464
    %v478 = vsub.f32 %v432, %v465
    %v479 = vsub.f32 %v433, %v465
    %v480 = vsub.f32 %v434, %v465
    %v481 = vsub.f32 %v435, %v465
    %v482 = vmul.f32 %v466, %v466
    %v483 = vmul.f32 %v467, %v467
    %v484 = vmul.f32 %v468, %v468
    %v485 = vmul.f32 %v469, %v469
    %v486 = vmul.f32 %v470, %v470
    %v487 = vmul.f32 %v471, %v471
    %v488 = vmul.f32 %v472, %v472
    %v489 = vmul.f32 %v473, %v473
    %v490 = vmul.f32 %v474, %v474
    %v491 = vmul.f32 %v475, %v475
    %v492 = vmul.f32 %v476, %v476
    %v493 = vmul.f32 %v477, %v477
    %v494 = vmul.f32 %v478, %v478
    %v495 = vmul.f32 %v479, %v479
    %v496 = vmul.f32 %v480, %v480
    %v497 = vmul.f32 %v481, %v481
    %v498 = vadd.f32 %v482, %v483
    %v499 = vadd.f32 %v498, %v484
    %v500 = vsel %vm438, %v485, 0.0
    %v501 = vadd.f32 %v499, %v500
    %502 = vadd.xlane.f32.xlu0 %v501
    %v503 = vpop.xlane.xlu0 %502
    %v504 = vadd.f32 %v486, %v487
    %v505 = vadd.f32 %v504, %v488
    %v506 = vsel %vm438, %v489, 0.0
    %v507 = vadd.f32 %v505, %v506
    %508 = vadd.xlane.f32.xlu0 %v507
    %v509 = vpop.xlane.xlu0 %508
    %v510 = vadd.f32 %v490, %v491
    %v511 = vadd.f32 %v510, %v492
    %v512 = vsel %vm438, %v493, 0.0
    %v513 = vadd.f32 %v511, %v512
    %514 = vadd.xlane.f32.xlu0 %v513
    %v515 = vpop.xlane.xlu0 %514
    %v516 = vadd.f32 %v494, %v495
    %v517 = vadd.f32 %v516, %v496
    %v518 = vsel %vm438, %v497, 0.0
    %v519 = vadd.f32 %v517, %v518
    %520 = vadd.xlane.f32.xlu0 %v519
    %v521 = vpop.xlane.xlu0 %520
    %v522 = vmul.f32 %v503, %v461
    %v523 = vmul.f32 %v509, %v461
    %v524 = vmul.f32 %v515, %v461
    %v525 = vmul.f32 %v521, %v461
    %v526 = vadd.f32 %v522, 1e-05
    %v527 = vadd.f32 %v523, 1e-05
    %v528 = vadd.f32 %v524, 1e-05
    %v529 = vadd.f32 %v525, 1e-05
    %v530 = vrsqrt.pop %v526
    %v531 = vrsqrt.pop %v527
    %v532 = vrsqrt.pop %v528
    %v533 = vrsqrt.pop %v529
    %v534 = vmul.f32 %v466, %v530
    %v535 = vmul.f32 %v467, %v530
    %v536 = vmul.f32 %v468, %v530
    %v537 = vmul.f32 %v469, %v530
    %v538 = vmul.f32 %v470, %v531
    %v539 = vmul.f32 %v471, %v531
    %v540 = vmul.f32 %v472, %v531
    %v541 = vmul.f32 %v473, %v531
    %v542 = vmul.f32 %v474, %v532
    %v543 = vmul.f32 %v475, %v532
    %v544 = vmul.f32 %v476, %v532
    %v545 = vmul.f32 %v477, %v532
    %v546 = vmul.f32 %v478, %v533
    %v547 = vmul.f32 %v479, %v533
    %v548 = vmul.f32 %v480, %v533
    %v549 = vmul.f32 %v481, %v533
    %v550 = vld [vmem:[%s5] sm:$0xf]
    %v552 = vlaneseq
    %v553 = vshrl.u32 %v552, 7
    %v554 = vsub.s32 0, %v553
    %v555 = vrot.slane %v550, %v554
    %v556 = vlaneseq
    %v557 = vshrl.u32 %v556, 7
    %v558 = vsub.s32 1, %v557
    %v559 = vrot.slane %v550, %v558
    %v560 = vlaneseq
    %v561 = vshrl.u32 %v560, 7
    %v562 = vsub.s32 2, %v561
    %v563 = vrot.slane %v550, %v562
    %v564 = vlaneseq
    %v565 = vshrl.u32 %v564, 7
    %v566 = vsub.s32 3, %v565
    %v567 = vrot.slane %v550, %v566
    %v572 = vmul.f32 %v534, %v555
    %v573 = vmul.f32 %v535, %v559
    %v574 = vmul.f32 %v536, %v563
    %v575 = vmul.f32 %v537, %v567
    %v576 = vmul.f32 %v538, %v555
    %v577 = vmul.f32 %v539, %v559
    %v578 = vmul.f32 %v540, %v563
    %v579 = vmul.f32 %v541, %v567
    %v580 = vmul.f32 %v542, %v555
    %v581 = vmul.f32 %v543, %v559
    %v582 = vmul.f32 %v544, %v563
    %v583 = vmul.f32 %v545, %v567
    %v584 = vmul.f32 %v546, %v555
    %v585 = vmul.f32 %v547, %v559
    %v586 = vmul.f32 %v548, %v563
    %v587 = vmul.f32 %v549, %v567
    %v588 = vld [vmem:[%s6] sm:$0xf]
    %v590 = vlaneseq
    %v591 = vshrl.u32 %v590, 7
    %v592 = vsub.s32 0, %v591
    %v593 = vrot.slane %v588, %v592
    %v594 = vlaneseq
    %v595 = vshrl.u32 %v594, 7
    %v596 = vsub.s32 1, %v595
    %v597 = vrot.slane %v588, %v596
    %v598 = vlaneseq
    %v599 = vshrl.u32 %v598, 7
    %v600 = vsub.s32 2, %v599
    %v601 = vrot.slane %v588, %v600
    %v602 = vlaneseq
    %v603 = vshrl.u32 %v602, 7
    %v604 = vsub.s32 3, %v603
    %v605 = vrot.slane %v588, %v604
    %v610 = vadd.f32 %v572, %v593
    %v611 = vadd.f32 %v573, %v597
    %v612 = vadd.f32 %v574, %v601
    %v613 = vadd.f32 %v575, %v605
    %v614 = vadd.f32 %v576, %v593
    %v615 = vadd.f32 %v577, %v597
    %v616 = vadd.f32 %v578, %v601
    %v617 = vadd.f32 %v579, %v605
    %v618 = vadd.f32 %v580, %v593
    %v619 = vadd.f32 %v581, %v597
    %v620 = vadd.f32 %v582, %v601
    %v621 = vadd.f32 %v583, %v605
    %v622 = vadd.f32 %v584, %v593
    %v623 = vadd.f32 %v585, %v597
    %v624 = vadd.f32 %v586, %v601
    %v625 = vadd.f32 %v587, %v605
    %v626 = vpack.c.bf16 %v614, %v610
    %v627 = vpack.c.bf16 %v615, %v611
    %v628 = vpack.c.bf16 %v616, %v612
    %v629 = vpack.c.bf16 %v617, %v613
    %v630 = vpack.c.bf16 %v622, %v618
    %v631 = vpack.c.bf16 %v623, %v619
    %v632 = vpack.c.bf16 %v624, %v620
    %v633 = vpack.c.bf16 %v625, %v621
    %v634 = vmax.bf16 %v626, 0
    %v635 = vmax.bf16 %v627, 0
    %v636 = vmax.bf16 %v628, 0
    %v637 = vmax.bf16 %v629, 0
    %v638 = vmax.bf16 %v630, 0
    %v639 = vmax.bf16 %v631, 0
    %v640 = vmax.bf16 %v632, 0
    %v641 = vmax.bf16 %v633, 0
    %v642 = vld [vmem:[#allocation6] sm:$0xff]
    %v643 = vld [vmem:[#allocation6 + $0x8] sm:$0xf]
    %v644 = vld [vmem:[#allocation6 + $0xc] sm:$0xff]
    %v645 = vld [vmem:[#allocation6 + $0x14] sm:$0xf]
    %v646 = vld [vmem:[#allocation6 + $0x18] sm:$0xff]
    %v647 = vld [vmem:[#allocation6 + $0x20] sm:$0xf]
    %v648 = vld [vmem:[#allocation6 + $0x24] sm:$0xff]
    %v649 = vld [vmem:[#allocation6 + $0x2c] sm:$0xf]
    %v650 = vld [vmem:[#allocation6 + $0x30] sm:$0xff]
    %v651 = vld [vmem:[#allocation6 + $0x38] sm:$0xf]
    %v652 = vld [vmem:[#allocation6 + $0x3c] sm:$0xff]
    %v653 = vld [vmem:[#allocation6 + $0x44] sm:$0xf]
    %v654 = vld [vmem:[#allocation6 + $0x48] sm:$0xff]
    %v655 = vld [vmem:[#allocation6 + $0x50] sm:$0xf]
    %v656 = vld [vmem:[#allocation6 + $0x54] sm:$0xff]
    %v657 = vld [vmem:[#allocation6 + $0x5c] sm:$0xf]
    %v658 = vld [vmem:[#allocation6 + $0x60] sm:$0xff]
    %v659 = vld [vmem:[#allocation6 + $0x68] sm:$0xf]
    %v660 = vld [vmem:[#allocation6 + $0x6c] sm:$0xff]
    %v661 = vld [vmem:[#allocation6 + $0x74] sm:$0xf]
    %v662 = vld [vmem:[#allocation6 + $0x78] sm:$0xff]
    %v663 = vld [vmem:[#allocation6 + $0x80] sm:$0xf]
    %v664 = vld [vmem:[#allocation6 + $0x84] sm:$0xff]
    %v665 = vld [vmem:[#allocation6 + $0x8c] sm:$0xf]
    %v666 = vld [vmem:[#allocation6 + $0x90] sm:$0xff]
    %v667 = vld [vmem:[#allocation6 + $0x98] sm:$0xf]
    %v668 = vld [vmem:[#allocation6 + $0x9c] sm:$0xff]
    %v669 = vld [vmem:[#allocation6 + $0xa4] sm:$0xf]
    %v670 = vld [vmem:[#allocation6 + $0xa8] sm:$0xff]
    %v671 = vld [vmem:[#allocation6 + $0xb0] sm:$0xf]
    %v672 = vld [vmem:[#allocation6 + $0xb4] sm:$0xff]
    %v673 = vld [vmem:[#allocation6 + $0xbc] sm:$0xf]
    %v674 = vld [vmem:[#allocation6 + $0xc0] sm:$0xff]
    %v675 = vld [vmem:[#allocation6 + $0xc8] sm:$0xf]
    %v676 = vld [vmem:[#allocation6 + $0xcc] sm:$0xff]
    %v677 = vld [vmem:[#allocation6 + $0xd4] sm:$0xf]
    %v678 = vld [vmem:[#allocation6 + $0xd8] sm:$0xff]
    %v679 = vld [vmem:[#allocation6 + $0xe0] sm:$0xf]
    %v680 = vld [vmem:[#allocation6 + $0xe4] sm:$0xff]
    %v681 = vld [vmem:[#allocation6 + $0xec] sm:$0xf]
    %v682 = vld [vmem:[#allocation6 + $0xf0] sm:$0xff]
    %v683 = vld [vmem:[#allocation6 + $0xf8] sm:$0xf]
    %v684 = vld [vmem:[#allocation6 + $0xfc] sm:$0xff]
    %v685 = vld [vmem:[#allocation6 + $0x104] sm:$0xf]
    %v686 = vld [vmem:[#allocation6 + $0x108] sm:$0xff]
    %v687 = vld [vmem:[#allocation6 + $0x110] sm:$0xf]
    %v688 = vld [vmem:[#allocation6 + $0x114] sm:$0xff]
    %v689 = vld [vmem:[#allocation6 + $0x11c] sm:$0xf]
    %v690 = vld [vmem:[#allocation6 + $0x120] sm:$0xff]
    %v691 = vld [vmem:[#allocation6 + $0x128] sm:$0xf]
    %v692 = vld [vmem:[#allocation6 + $0x12c] sm:$0xff]
    %v693 = vld [vmem:[#allocation6 + $0x134] sm:$0xf]
    %v694 = vld [vmem:[#allocation6 + $0x138] sm:$0xff]
    %v695 = vld [vmem:[#allocation6 + $0x140] sm:$0xf]
    %v696 = vld [vmem:[#allocation6 + $0x144] sm:$0xff]
    %v697 = vld [vmem:[#allocation6 + $0x14c] sm:$0xf]
    %v698 = vld [vmem:[#allocation6 + $0x150] sm:$0xff]
    %v699 = vld [vmem:[#allocation6 + $0x158] sm:$0xf]
    %v700 = vld [vmem:[#allocation6 + $0x15c] sm:$0xff]
    %v701 = vld [vmem:[#allocation6 + $0x164] sm:$0xf]
    %v702 = vld [vmem:[#allocation6 + $0x168] sm:$0xff]
    %v703 = vld [vmem:[#allocation6 + $0x170] sm:$0xf]
    %v704 = vld [vmem:[#allocation6 + $0x174] sm:$0xff]
    %v705 = vld [vmem:[#allocation6 + $0x17c] sm:$0xf]
    %v706 = vld [vmem:[#allocation6 + $0x180] sm:$0xff]
    %v707 = vld [vmem:[#allocation6 + $0x188] sm:$0xf]
    %v708 = vld [vmem:[#allocation6 + $0x18c] sm:$0xff]
    %v709 = vld [vmem:[#allocation6 + $0x194] sm:$0xf]
    %v710 = vld [vmem:[#allocation6 + $0x198] sm:$0xff]
    %v711 = vld [vmem:[#allocation6 + $0x1a0] sm:$0xf]
    %v712 = vld [vmem:[#allocation6 + $0x1a4] sm:$0xff]
    %v713 = vld [vmem:[#allocation6 + $0x1ac] sm:$0xf]
    %v714 = vld [vmem:[#allocation6 + $0x1b0] sm:$0xff]
    %v715 = vld [vmem:[#allocation6 + $0x1b8] sm:$0xf]
    %v716 = vld [vmem:[#allocation6 + $0x1bc] sm:$0xff]
    %v717 = vld [vmem:[#allocation6 + $0x1c4] sm:$0xf]
    %v718 = vld [vmem:[#allocation6 + $0x1c8] sm:$0xff]
    %v719 = vld [vmem:[#allocation6 + $0x1d0] sm:$0xf]
    %v720 = vld [vmem:[#allocation6 + $0x1d4] sm:$0xff]
    %v721 = vld [vmem:[#allocation6 + $0x1dc] sm:$0xf]
    %v722 = vld [vmem:[#allocation6 + $0x1e0] sm:$0xff]
    %v723 = vld [vmem:[#allocation6 + $0x1e8] sm:$0xf]
    %v724 = vld [vmem:[#allocation6 + $0x1ec] sm:$0xff]
    %v725 = vld [vmem:[#allocation6 + $0x1f4] sm:$0xf]
    %v726 = vld [vmem:[#allocation6 + $0x1f8] sm:$0xff]
    %v727 = vld [vmem:[#allocation6 + $0x200] sm:$0xf]
    %v728 = vld [vmem:[#allocation6 + $0x204] sm:$0xff]
    %v729 = vld [vmem:[#allocation6 + $0x20c] sm:$0xf]
    %v730 = vld [vmem:[#allocation6 + $0x210] sm:$0xff]
    %v731 = vld [vmem:[#allocation6 + $0x218] sm:$0xf]
    %v732 = vld [vmem:[#allocation6 + $0x21c] sm:$0xff]
    %v733 = vld [vmem:[#allocation6 + $0x224] sm:$0xf]
    %v734 = vld [vmem:[#allocation6 + $0x228] sm:$0xff]
    %v735 = vld [vmem:[#allocation6 + $0x230] sm:$0xf]
    %v736 = vld [vmem:[#allocation6 + $0x234] sm:$0xff]
    %v737 = vld [vmem:[#allocation6 + $0x23c] sm:$0xf]
    %v738 = vld [vmem:[#allocation6 + $0x240] sm:$0xff]
    %v739 = vld [vmem:[#allocation6 + $0x248] sm:$0xf]
    %v740 = vld [vmem:[#allocation6 + $0x24c] sm:$0xff]
    %v741 = vld [vmem:[#allocation6 + $0x254] sm:$0xf]
    %v742 = vld [vmem:[%s8] sm:$0x7]
    %v744 = vlaneseq
    %v745 = vshrl.u32 %v744, 7
    %v746 = vsub.s32 0, %v745
    %v747 = vrot.slane %v742, %v746
    %v748 = vlaneseq
    %v749 = vshrl.u32 %v748, 7
    %v750 = vsub.s32 1, %v749
    %v751 = vrot.slane %v742, %v750
    %v752 = vlaneseq
    %v753 = vshrl.u32 %v752, 7
    %v754 = vsub.s32 2, %v753
    %v755 = vrot.slane %v742, %v754
    %v859 = vunpack.c.l.b16 %v642
    %v860 = vunpack.c.h.b16 %v642
    %v861 = vunpack.c.l.b16 %v643
    %v862 = vunpack.c.l.b16 %v644
    %v863 = vunpack.c.h.b16 %v644
    %v864 = vunpack.c.l.b16 %v645
    %v865 = vunpack.c.l.b16 %v646
    %v866 = vunpack.c.h.b16 %v646
    %v867 = vunpack.c.l.b16 %v647
    %v868 = vunpack.c.l.b16 %v648
    %v869 = vunpack.c.h.b16 %v648
    %v870 = vunpack.c.l.b16 %v649
    %v871 = vunpack.c.l.b16 %v650
    %v872 = vunpack.c.h.b16 %v650
    %v873 = vunpack.c.l.b16 %v651
    %v874 = vunpack.c.l.b16 %v652
    %v875 = vunpack.c.h.b16 %v652
    %v876 = vunpack.c.l.b16 %v653
    %v877 = vunpack.c.l.b16 %v654
    %v878 = vunpack.c.h.b16 %v654
    %v879 = vunpack.c.l.b16 %v655
    %v880 = vunpack.c.l.b16 %v656
    %v881 = vunpack.c.h.b16 %v656
    %v882 = vunpack.c.l.b16 %v657
    %v883 = vunpack.c.l.b16 %v658
    %v884 = vunpack.c.h.b16 %v658
    %v885 = vunpack.c.l.b16 %v659
    %v886 = vunpack.c.l.b16 %v660
    %v887 = vunpack.c.h.b16 %v660
    %v888 = vunpack.c.l.b16 %v661
    %v889 = vunpack.c.l.b16 %v662
    %v890 = vunpack.c.h.b16 %v662
    %v891 = vunpack.c.l.b16 %v663
    %v892 = vunpack.c.l.b16 %v664
    %v893 = vunpack.c.h.b16 %v664
    %v894 = vunpack.c.l.b16 %v665
    %v895 = vunpack.c.l.b16 %v666
    %v896 = vunpack.c.h.b16 %v666
    %v897 = vunpack.c.l.b16 %v667
    %v898 = vunpack.c.l.b16 %v668
    %v899 = vunpack.c.h.b16 %v668
    %v900 = vunpack.c.l.b16 %v669
    %v901 = vunpack.c.l.b16 %v670
    %v902 = vunpack.c.h.b16 %v670
    %v903 = vunpack.c.l.b16 %v671
    %v904 = vunpack.c.l.b16 %v672
    %v905 = vunpack.c.h.b16 %v672
    %v906 = vunpack.c.l.b16 %v673
    %v907 = vunpack.c.l.b16 %v674
    %v908 = vunpack.c.h.b16 %v674
    %v909 = vunpack.c.l.b16 %v675
    %v910 = vunpack.c.l.b16 %v676
    %v911 = vunpack.c.h.b16 %v676
    %v912 = vunpack.c.l.b16 %v677
    %v913 = vunpack.c.l.b16 %v678
    %v914 = vunpack.c.h.b16 %v678
    %v915 = vunpack.c.l.b16 %v679
    %v916 = vunpack.c.l.b16 %v680
    %v917 = vunpack.c.h.b16 %v680
    %v918 = vunpack.c.l.b16 %v681
    %v919 = vunpack.c.l.b16 %v682
    %v920 = vunpack.c.h.b16 %v682
    %v921 = vunpack.c.l.b16 %v683
    %v922 = vunpack.c.l.b16 %v684
    %v923 = vunpack.c.h.b16 %v684
    %v924 = vunpack.c.l.b16 %v685
    %v925 = vunpack.c.l.b16 %v686
    %v926 = vunpack.c.h.b16 %v686
    %v927 = vunpack.c.l.b16 %v687
    %v928 = vunpack.c.l.b16 %v688
    %v929 = vunpack.c.h.b16 %v688
    %v930 = vunpack.c.l.b16 %v689
    %v931 = vunpack.c.l.b16 %v690
    %v932 = vunpack.c.h.b16 %v690
    %v933 = vunpack.c.l.b16 %v691
    %v934 = vunpack.c.l.b16 %v692
    %v935 = vunpack.c.h.b16 %v692
    %v936 = vunpack.c.l.b16 %v693
    %v937 = vunpack.c.l.b16 %v694
    %v938 = vunpack.c.h.b16 %v694
    %v939 = vunpack.c.l.b16 %v695
    %v940 = vunpack.c.l.b16 %v696
    %v941 = vunpack.c.h.b16 %v696
    %v942 = vunpack.c.l.b16 %v697
    %v943 = vunpack.c.l.b16 %v698
    %v944 = vunpack.c.h.b16 %v698
    %v945 = vunpack.c.l.b16 %v699
    %v946 = vunpack.c.l.b16 %v700
    %v947 = vunpack.c.h.b16 %v700
    %v948 = vunpack.c.l.b16 %v701
    %v949 = vunpack.c.l.b16 %v702
    %v950 = vunpack.c.h.b16 %v702
    %v951 = vunpack.c.l.b16 %v703
    %v952 = vunpack.c.l.b16 %v704
    %v953 = vunpack.c.h.b16 %v704
    %v954 = vunpack.c.l.b16 %v705
    %v955 = vunpack.c.l.b16 %v706
    %v956 = vunpack.c.h.b16 %v706
    %v957 = vunpack.c.l.b16 %v707
    %v958 = vunpack.c.l.b16 %v708
    %v959 = vunpack.c.h.b16 %v708
    %v960 = vunpack.c.l.b16 %v709
    %v961 = vunpack.c.l.b16 %v710
    %v962 = vunpack.c.h.b16 %v710
    %v963 = vunpack.c.l.b16 %v711
    %v964 = vunpack.c.l.b16 %v712
    %v965 = vunpack.c.h.b16 %v712
    %v966 = vunpack.c.l.b16 %v713
    %v967 = vunpack.c.l.b16 %v714
    %v968 = vunpack.c.h.b16 %v714
    %v969 = vunpack.c.l.b16 %v715
    %v970 = vunpack.c.l.b16 %v716
    %v971 = vunpack.c.h.b16 %v716
    %v972 = vunpack.c.l.b16 %v717
    %v973 = vunpack.c.l.b16 %v718
    %v974 = vunpack.c.h.b16 %v718
    %v975 = vunpack.c.l.b16 %v719
    %v976 = vunpack.c.l.b16 %v720
    %v977 = vunpack.c.h.b16 %v720
    %v978 = vunpack.c.l.b16 %v721
    %v979 = vunpack.c.l.b16 %v722
    %v980 = vunpack.c.h.b16 %v722
    %v981 = vunpack.c.l.b16 %v723
    %v982 = vunpack.c.l.b16 %v724
    %v983 = vunpack.c.h.b16 %v724
    %v984 = vunpack.c.l.b16 %v725
    %v985 = vunpack.c.l.b16 %v726
    %v986 = vunpack.c.h.b16 %v726
    %v987 = vunpack.c.l.b16 %v727
    %v988 = vunpack.c.l.b16 %v728
    %v989 = vunpack.c.h.b16 %v728
    %v990 = vunpack.c.l.b16 %v729
    %v991 = vunpack.c.l.b16 %v730
    %v992 = vunpack.c.h.b16 %v730
    %v993 = vunpack.c.l.b16 %v731
    %v994 = vunpack.c.l.b16 %v732
    %v995 = vunpack.c.h.b16 %v732
    %v996 = vunpack.c.l.b16 %v733
    %v997 = vunpack.c.l.b16 %v734
    %v998 = vunpack.c.h.b16 %v734
    %v999 = vunpack.c.l.b16 %v735
    %v1000 = vunpack.c.l.b16 %v736
    %v1001 = vunpack.c.h.b16 %v736
    %v1002 = vunpack.c.l.b16 %v737
    %v1003 = vunpack.c.l.b16 %v738
    %v1004 = vunpack.c.h.b16 %v738
    %v1005 = vunpack.c.l.b16 %v739
    %v1006 = vunpack.c.l.b16 %v740
    %v1007 = vunpack.c.h.b16 %v740
    %v1008 = vunpack.c.l.b16 %v741
    %v1009 = vpack.c.b16 %v862, %v859
    %v1010 = vpack.c.b16 %v863, %v860
    %v1011 = vpack.c.b16 %v864, %v861
    %v1012 = vpack.c.b16 %v868, %v865
    %v1013 = vpack.c.b16 %v869, %v866
    %v1014 = vpack.c.b16 %v870, %v867
    %v1015 = vpack.c.b16 %v874, %v871
    %v1016 = vpack.c.b16 %v875, %v872
    %v1017 = vpack.c.b16 %v876, %v873
    %v1018 = vpack.c.b16 %v880, %v877
    %v1019 = vpack.c.b16 %v881, %v878
    %v1020 = vpack.c.b16 %v882, %v879
    %v1021 = vpack.c.b16 %v886, %v883
    %v1022 = vpack.c.b16 %v887, %v884
    %v1023 = vpack.c.b16 %v888, %v885
    %v1024 = vpack.c.b16 %v892, %v889
    %v1025 = vpack.c.b16 %v893, %v890
    %v1026 = vpack.c.b16 %v894, %v891
    %v1027 = vpack.c.b16 %v898, %v895
    %v1028 = vpack.c.b16 %v899, %v896
    %v1029 = vpack.c.b16 %v900, %v897
    %v1030 = vpack.c.b16 %v904, %v901
    %v1031 = vpack.c.b16 %v905, %v902
    %v1032 = vpack.c.b16 %v906, %v903
    %v1033 = vpack.c.b16 %v910, %v907
    %v1034 = vpack.c.b16 %v911, %v908
    %v1035 = vpack.c.b16 %v912, %v909
    %v1036 = vpack.c.b16 %v916, %v913
    %v1037 = vpack.c.b16 %v917, %v914
    %v1038 = vpack.c.b16 %v918, %v915
    %v1039 = vpack.c.b16 %v922, %v919
    %v1040 = vpack.c.b16 %v923, %v920
    %v1041 = vpack.c.b16 %v924, %v921
    %v1042 = vpack.c.b16 %v928, %v925
    %v1043 = vpack.c.b16 %v929, %v926
    %v1044 = vpack.c.b16 %v930, %v927
    %v1045 = vpack.c.b16 %v934, %v931
    %v1046 = vpack.c.b16 %v935, %v932
    %v1047 = vpack.c.b16 %v936, %v933
    %v1048 = vpack.c.b16 %v940, %v937
    %v1049 = vpack.c.b16 %v941, %v938
    %v1050 = vpack.c.b16 %v942, %v939
    %v1051 = vpack.c.b16 %v946, %v943
    %v1052 = vpack.c.b16 %v947, %v944
    %v1053 = vpack.c.b16 %v948, %v945
    %v1054 = vpack.c.b16 %v952, %v949
    %v1055 = vpack.c.b16 %v953, %v950
    %v1056 = vpack.c.b16 %v954, %v951
    %v1057 = vpack.c.b16 %v958, %v955
    %v1058 = vpack.c.b16 %v959, %v956
    %v1059 = vpack.c.b16 %v960, %v957
    %v1060 = vpack.c.b16 %v964, %v961
    %v1061 = vpack.c.b16 %v965, %v962
    %v1062 = vpack.c.b16 %v966, %v963
    %v1063 = vpack.c.b16 %v970, %v967
    %v1064 = vpack.c.b16 %v971, %v968
    %v1065 = vpack.c.b16 %v972, %v969
    %v1066 = vpack.c.b16 %v976, %v973
    %v1067 = vpack.c.b16 %v977, %v974
    %v1068 = vpack.c.b16 %v978, %v975
    %v1069 = vpack.c.b16 %v982, %v979
    %v1070 = vpack.c.b16 %v983, %v980
    %v1071 = vpack.c.b16 %v984, %v981
    %v1072 = vpack.c.b16 %v988, %v985
    %v1073 = vpack.c.b16 %v989, %v986
    %v1074 = vpack.c.b16 %v990, %v987
    %v1075 = vpack.c.b16 %v994, %v991
    %v1076 = vpack.c.b16 %v995, %v992
    %v1077 = vpack.c.b16 %v996, %v993
    %v1078 = vpack.c.b16 %v1000, %v997
    %v1079 = vpack.c.b16 %v1001, %v998
    %v1080 = vpack.c.b16 %v1002, %v999
    %v1081 = vpack.c.b16 %v1006, %v1003
    %v1082 = vpack.c.b16 %v1007, %v1004
    %v1083 = vpack.c.b16 %v1008, %v1005
    %v1160 = vsel %vm438, %v637, 0
    %v1163 = vsel %vm438, %v641, 0
    %1165 = vmatprep.subr.bf16.mxu0 %v1010
    %1166 = vmatpush1.bf16.msra.mxu0 %v1009
    %1167 = vmatprep.subr.bf16.mxu0 %v1013
    %1168 = vmatpush1.bf16.msra.mxu0 %v1012
    %1169 = vmatprep.subr.bf16.mxu0 %v1016
    %1170 = vmatpush1.bf16.msra.mxu0 %v1015
    %1171 = vmatprep.subr.bf16.mxu0 %v1019
    %1172 = vmatpush1.bf16.msra.mxu0 %v1018
    %1173 = vmatprep.subr.bf16.mxu0 %v1022
    %1174 = vmatpush1.bf16.msra.mxu0 %v1021
    %1175 = vmatprep.subr.bf16.mxu0 %v1025
    %1176 = vmatpush1.bf16.msra.mxu0 %v1024
    %1177 = vmatprep.subr.bf16.mxu0 %v1028
    %1178 = vmatpush1.bf16.msra.mxu0 %v1027
    %1179 = vmatprep.subr.bf16.mxu0 %v1031
    %1180 = vmatpush1.bf16.msra.mxu0 %v1030
    %1181 = vmatprep.subr.bf16.mxu0 %v1034
    %1182 = vmatpush1.bf16.msra.mxu0 %v1033
    %1183 = vmatprep.subr.bf16.mxu0 %v1037
    %1184 = vmatpush1.bf16.msra.mxu0 %v1036
    %1185 = vmatprep.subr.bf16.mxu0 %v1040
    %1186 = vmatpush1.bf16.msra.mxu0 %v1039
    %1187 = vmatprep.subr.bf16.mxu0 %v1043
    %1188 = vmatpush1.bf16.msra.mxu0 %v1042
    %1189 = vmatprep.subr.bf16.mxu0 %v1046
    %1190 = vmatpush1.bf16.msra.mxu0 %v1045
    %1191 = vmatprep.subr.bf16.mxu0 %v1049
    %1192 = vmatpush1.bf16.msra.mxu0 %v1048
    %1193 = vmatprep.subr.bf16.mxu0 %v1052
    %1194 = vmatpush1.bf16.msra.mxu0 %v1051
    %1195 = vmatprep.subr.bf16.mxu0 %v1055
    %1196 = vmatpush1.bf16.msra.mxu0 %v1054
    %1197 = vmatprep.mubr.bf16.mxu0 %v635
    %1198 = vmatmul.mubr.bf16.gmra.mrb[0].mxu0 %v634
    %v1199 = vpop.f32.mrb[0].mxu0
    %v1200 = vadd.f32 %v747, %v1199
    %v1201 = vpop.f32.mrb[0].mxu0
    %v1202 = vadd.f32 %v751, %v1201
    %v1203 = vpop.f32.mrb[0].mxu0
    %v1204 = vadd.f32 %v747, %v1203
    %v1205 = vpop.f32.mrb[0].mxu0
    %v1206 = vadd.f32 %v751, %v1205
    %1207 = vmatprep.mubr.bf16.mxu0 %v639
    %1208 = vmatmul.mubr.bf16.gmra.mrb[0].mxu0 %v638
    %v1209 = vpop.f32.mrb[0].mxu0
    %v1210 = vadd.f32 %v747, %v1209
    %v1211 = vpop.f32.mrb[0].mxu0
    %v1212 = vadd.f32 %v751, %v1211
    %v1213 = vpop.f32.mrb[0].mxu0
    %v1214 = vadd.f32 %v747, %v1213
    %v1215 = vpop.f32.mrb[0].mxu0
    %v1216 = vadd.f32 %v751, %v1215
    %1217 = vdwg.mxu0
    %1218 = vmatprep.subr.bf16.mxu0 %v1058
    %1219 = vmatpush1.bf16.msra.mxu0 %v1057
    %1220 = vmatprep.subr.bf16.mxu0 %v1061
    %1221 = vmatpush1.bf16.msra.mxu0 %v1060
    %1222 = vmatprep.subr.bf16.mxu0 %v1064
    %1223 = vmatpush1.bf16.msra.mxu0 %v1063
    %1224 = vmatprep.subr.bf16.mxu0 %v1067
    %1225 = vmatpush1.bf16.msra.mxu0 %v1066
    %1226 = vmatprep.subr.bf16.mxu0 %v1070
    %1227 = vmatpush1.bf16.msra.mxu0 %v1069
    %1228 = vmatprep.subr.bf16.mxu0 %v1073
    %1229 = vmatpush1.bf16.msra.mxu0 %v1072
    %1230 = vmatprep.subr.bf16.mxu0 %v1076
    %1231 = vmatpush1.bf16.msra.mxu0 %v1075
    %1232 = vmatprep.subr.bf16.mxu0 %v1079
    %1233 = vmatpush1.bf16.msra.mxu0 %v1078
    %1234 = vmatprep.subr.bf16.mxu0 %v1082
    %1235 = vmatpush1.bf16.msra.mxu0 %v1081
    %1236 = vmatprep.subr.bf16.mxu0 0
    %1237 = vmatpush1.bf16.msra.mxu0 0
    %1238 = vmatprep.subr.bf16.mxu0 0
    %1239 = vmatpush1.bf16.msra.mxu0 0
    %1240 = vmatprep.subr.bf16.mxu0 0
    %1241 = vmatpush1.bf16.msra.mxu0 0
    %1242 = vmatprep.subr.bf16.mxu0 0
    %1243 = vmatpush1.bf16.msra.mxu0 0
    %1244 = vmatprep.subr.bf16.mxu0 0
    %1245 = vmatpush1.bf16.msra.mxu0 0
    %1246 = vmatprep.subr.bf16.mxu0 0
    %1247 = vmatpush1.bf16.msra.mxu0 0
    %1248 = vmatprep.subr.bf16.mxu0 0
    %1249 = vmatpush1.bf16.msra.mxu0 0
    %1250 = vmatprep.mubr.bf16.mxu0 %v1160
    %1251 = vmatmul.mubr.bf16.gmra.mrb[0].mxu0 %v636
    %v1252 = vpop.f32.mrb[0].mxu0
    %v1253 = vadd.f32 %v1200, %v1252
    %v1254 = vpop.f32.mrb[0].mxu0
    %v1255 = vadd.f32 %v1202, %v1254
    %v1256 = vpop.f32.mrb[0].mxu0
    %v1257 = vadd.f32 %v1204, %v1256
    %v1258 = vpop.f32.mrb[0].mxu0
    %v1259 = vadd.f32 %v1206, %v1258
    %1260 = vmatprep.mubr.bf16.mxu0 %v1163
    %1261 = vmatmul.mubr.bf16.gmra.mrb[0].mxu0 %v640
    %v1262 = vpop.f32.mrb[0].mxu0
    %v1263 = vadd.f32 %v1210, %v1262
    %v1264 = vpop.f32.mrb[0].mxu0
    %v1265 = vadd.f32 %v1212, %v1264
    %v1266 = vpop.f32.mrb[0].mxu0
    %v1267 = vadd.f32 %v1214, %v1266
    %v1268 = vpop.f32.mrb[0].mxu0
    %v1269 = vadd.f32 %v1216, %v1268
    %1270 = vdwg.mxu0
    %1271 = vmatprep.subr.bf16.mxu0 0
    %1272 = vmatpush1.bf16.msra.mxu0 %v1011
    %1273 = vmatprep.subr.bf16.mxu0 0
    %1274 = vmatpush1.bf16.msra.mxu0 %v1014
    %1275 = vmatprep.subr.bf16.mxu0 0
    %1276 = vmatpush1.bf16.msra.mxu0 %v1017
    %1277 = vmatprep.subr.bf16.mxu0 0
    %1278 = vmatpush1.bf16.msra.mxu0 %v1020
    %1279 = vmatprep.subr.bf16.mxu0 0
    %1280 = vmatpush1.bf16.msra.mxu0 %v1023
    %1281 = vmatprep.subr.bf16.mxu0 0
    %1282 = vmatpush1.bf16.msra.mxu0 %v1026
    %1283 = vmatprep.subr.bf16.mxu0 0
    %1284 = vmatpush1.bf16.msra.mxu0 %v1029
    %1285 = vmatprep.subr.bf16.mxu0 0
    %1286 = vmatpush1.bf16.msra.mxu0 %v1032
    %1287 = vmatprep.subr.bf16.mxu0 0
    %1288 = vmatpush1.bf16.msra.mxu0 %v1035
    %1289 = vmatprep.subr.bf16.mxu0 0
    %1290 = vmatpush1.bf16.msra.mxu0 %v1038
    %1291 = vmatprep.subr.bf16.mxu0 0
    %1292 = vmatpush1.bf16.msra.mxu0 %v1041
    %1293 = vmatprep.subr.bf16.mxu0 0
    %1294 = vmatpush1.bf16.msra.mxu0 %v1044
    %1295 = vmatprep.subr.bf16.mxu0 0
    %1296 = vmatpush1.bf16.msra.mxu0 %v1047
    %1297 = vmatprep.subr.bf16.mxu0 0
    %1298 = vmatpush1.bf16.msra.mxu0 %v1050
    %1299 = vmatprep.subr.bf16.mxu0 0
    %1300 = vmatpush1.bf16.msra.mxu0 %v1053
    %1301 = vmatprep.subr.bf16.mxu0 0
    %1302 = vmatpush1.bf16.msra.mxu0 %v1056
    %1303 = vmatprep.mubr.bf16.mxu0 %v635
    %1304 = vmatmul.mubr.bf16.gmra.mrb[0].mxu0 %v634
    %v1305 = vpop.f32.mrb[0].mxu0
    %v1306 = vadd.f32 %v755, %v1305
    %v1307 = vpop.f32.mrb[0].mxu0
    %v1308 = vpop.f32.mrb[0].mxu0
    %v1309 = vadd.f32 %v755, %v1308
    %v1310 = vpop.f32.mrb[0].mxu0
    %1311 = vmatprep.mubr.bf16.mxu0 %v639
    %1312 = vmatmul.mubr.bf16.gmra.mrb[0].mxu0 %v638
    %v1313 = vpop.f32.mrb[0].mxu0
    %v1314 = vadd.f32 %v755, %v1313
    %v1315 = vpop.f32.mrb[0].mxu0
    %v1316 = vpop.f32.mrb[0].mxu0
    %v1317 = vadd.f32 %v755, %v1316
    %v1318 = vpop.f32.mrb[0].mxu0
    %1319 = vdwg.mxu0
    %1320 = vmatprep.subr.bf16.mxu0 0
    %1321 = vmatpush1.bf16.msra.mxu0 %v1059
    %1322 = vmatprep.subr.bf16.mxu0 0
    %1323 = vmatpush1.bf16.msra.mxu0 %v1062
    %1324 = vmatprep.subr.bf16.mxu0 0
    %1325 = vmatpush1.bf16.msra.mxu0 %v1065
    %1326 = vmatprep.subr.bf16.mxu0 0
    %1327 = vmatpush1.bf16.msra.mxu0 %v1068
    %1328 = vmatprep.subr.bf16.mxu0 0
    %1329 = vmatpush1.bf16.msra.mxu0 %v1071
    %1330 = vmatprep.subr.bf16.mxu0 0
    %1331 = vmatpush1.bf16.msra.mxu0 %v1074
    %1332 = vmatprep.subr.bf16.mxu0 0
    %1333 = vmatpush1.bf16.msra.mxu0 %v1077
    %1334 = vmatprep.subr.bf16.mxu0 0
    %1335 = vmatpush1.bf16.msra.mxu0 %v1080
    %1336 = vmatprep.subr.bf16.mxu0 0
    %1337 = vmatpush1.bf16.msra.mxu0 %v1083
    %1338 = vmatprep.subr.bf16.mxu0 0
    %1339 = vmatpush1.bf16.msra.mxu0 0
    %1340 = vmatprep.subr.bf16.mxu0 0
    %1341 = vmatpush1.bf16.msra.mxu0 0
    %1342 = vmatprep.subr.bf16.mxu0 0
    %1343 = vmatpush1.bf16.msra.mxu0 0
    %1344 = vmatprep.subr.bf16.mxu0 0
    %1345 = vmatpush1.bf16.msra.mxu0 0
    %1346 = vmatprep.subr.bf16.mxu0 0
    %1347 = vmatpush1.bf16.msra.mxu0 0
    %1348 = vmatprep.subr.bf16.mxu0 0
    %1349 = vmatpush1.bf16.msra.mxu0 0
    %1350 = vmatprep.subr.bf16.mxu0 0
    %1351 = vmatpush1.bf16.msra.mxu0 0
    %1352 = vmatprep.mubr.bf16.mxu0 %v1160
    %1353 = vmatmul.mubr.bf16.gmra.mrb[0].mxu0 %v636
    %v1354 = vpop.f32.mrb[0].mxu0
    %v1355 = vadd.f32 %v1306, %v1354
    %v1356 = vpop.f32.mrb[0].mxu0
    %v1357 = vpop.f32.mrb[0].mxu0
    %v1358 = vadd.f32 %v1309, %v1357
    %v1359 = vpop.f32.mrb[0].mxu0
    %1360 = vmatprep.mubr.bf16.mxu0 %v1163
    %1361 = vmatmul.mubr.bf16.gmra.mrb[0].mxu0 %v640
    %v1362 = vpop.f32.mrb[0].mxu0
    %v1363 = vadd.f32 %v1314, %v1362
    %v1364 = vpop.f32.mrb[0].mxu0
    %v1365 = vpop.f32.mrb[0].mxu0
    %v1366 = vadd.f32 %v1317, %v1365
    %v1367 = vpop.f32.mrb[0].mxu0
    %1368 = vdwg.mxu0
    %v1369 = vmax.f32 %v1253, 0.0
    %v1370 = vmax.f32 %v1255, 0.0
    %v1371 = vmax.f32 %v1355, 0.0
    %v1372 = vmax.f32 %v1257, 0.0
    %v1373 = vmax.f32 %v1259, 0.0
    %v1374 = vmax.f32 %v1358, 0.0
    %v1375 = vmax.f32 %v1263, 0.0
    %v1376 = vmax.f32 %v1265, 0.0
    %v1377 = vmax.f32 %v1363, 0.0
    %v1378 = vmax.f32 %v1267, 0.0
    %v1379 = vmax.f32 %v1269, 0.0
    %v1380 = vmax.f32 %v1366, 0.0
    %v1381 = vld [vmem:[%s9] sm:$0x7]
    %v1383 = vlaneseq
    %v1384 = vshrl.u32 %v1383, 7
    %v1385 = vsub.s32 0, %v1384
    %v1386 = vrot.slane %v1381, %v1385
    %v1387 = vlaneseq
    %v1388 = vshrl.u32 %v1387, 7
    %v1389 = vsub.s32 1, %v1388
    %v1390 = vrot.slane %v1381, %v1389
    %v1391 = vlaneseq
    %v1392 = vshrl.u32 %v1391, 7
    %v1393 = vsub.s32 2, %v1392
    %v1394 = vrot.slane %v1381, %v1393
    %v1398 = vmul.f32 %v1369, %v1386
    %v1399 = vmul.f32 %v1370, %v1390
    %v1400 = vmul.f32 %v1371, %v1394
    %v1401 = vmul.f32 %v1372, %v1386
    %v1402 = vmul.f32 %v1373, %v1390
    %v1403 = vmul.f32 %v1374, %v1394
    %v1404 = vmul.f32 %v1375, %v1386
    %v1405 = vmul.f32 %v1376, %v1390
    %v1406 = vmul.f32 %v1377, %v1394
    %v1407 = vmul.f32 %v1378, %v1386
    %v1408 = vmul.f32 %v1379, %v1390
    %v1409 = vmul.f32 %v1380, %v1394
    %v1410 = vadd.f32 %v1398, %v1399
    %vm1411 = vcmask 359424
    %v1412 = vsel %vm1411, %v1400, 0.0
    %v1413 = vadd.f32 %v1410, %v1412
    %1414 = vadd.xlane.f32.xlu0 %v1413
    %v1415 = vpop.xlane.xlu0 %1414
    %v1416 = vadd.f32 %v1401, %v1402
    %v1417 = vsel %vm1411, %v1403, 0.0
    %v1418 = vadd.f32 %v1416, %v1417
    %1419 = vadd.xlane.f32.xlu0 %v1418
    %v1420 = vpop.xlane.xlu0 %1419
    %v1421 = vadd.f32 %v1404, %v1405
    %v1422 = vsel %vm1411, %v1406, 0.0
    %v1423 = vadd.f32 %v1421, %v1422
    %1424 = vadd.xlane.f32.xlu0 %v1423
    %v1425 = vpop.xlane.xlu0 %1424
    %v1426 = vadd.f32 %v1407, %v1408
    %v1427 = vsel %vm1411, %v1409, 0.0
    %v1428 = vadd.f32 %v1426, %v1427
    %1429 = vadd.xlane.f32.xlu0 %v1428
    %v1430 = vpop.xlane.xlu0 %1429
    %v1431 = vld [vmem:[#allocation2] sm:$0x1]
    %1433 = vset.pattern.permute.xlu0 0
    %1434 = vperm.xlu0 %1433, %v1431
    %v1435 = vpop.permute.xlu0 %1434
    %v1437 = vlaneseq
    %v1438 = vshrl.u32 %v1437, 7
    %v1439 = vsub.s32 0, %v1438
    %v1440 = vrot.slane %v1435, %v1439
    %v1441 = vadd.f32 %v1415, %v1440
    %v1442 = vadd.f32 %v1420, %v1440
    %v1443 = vadd.f32 %v1425, %v1440
    %v1444 = vadd.f32 %v1430, %v1440
    %v1449 = vlaneseq
    %v1450 = vand.u32 %v1449, 127
    %v1451 = vlaneseq
    %v1452 = vshrl.u32 %v1451, 7
    %v1453 = vsub.s32 %v1450, %v1452
    %v1454 = vrot.slane %v1441, %v1453
    %v1455 = vadd.s32 %v1450, 4294967288
    %v1456 = vlaneseq
    %v1457 = vshrl.u32 %v1456, 7
    %v1458 = vsub.s32 %v1455, %v1457
    %v1459 = vrot.slane %v1442, %v1458
    %vm1460 = vcmask 130112
    %v1461 = vsel %vm1460, %v1459, %v1454
    %v1462 = vadd.s32 %v1450, 4294967280
    %v1463 = vlaneseq
    %v1464 = vshrl.u32 %v1463, 7
    %v1465 = vsub.s32 %v1462, %v1464
    %v1466 = vrot.slane %v1443, %v1465
    %vm1467 = vcmask 195712
    %v1468 = vsel %vm1467, %v1466, %v1461
    %v1469 = vadd.s32 %v1450, 4294967272
    %v1470 = vlaneseq
    %v1471 = vshrl.u32 %v1470, 7
    %v1472 = vsub.s32 %v1469, %v1471
    %v1473 = vrot.slane %v1444, %v1472
    %vm1474 = vcmask 261312
    %v1475 = vsel %vm1474, %v1473, %v1468
    %vm1477 = vcmask 253952
    %1478 = vst.msk [vmem:[#allocation8] sm:$0x1] %vm1477, %v1475
    // Predicated region
    $region54: #{tpu_custom_call.1} parent=1 // pred_check
      _
    $region55: #{tpu_custom_call.1} parent=1 // pred_check_branch
      %1480 = sbr.rel (0) target = $region57
    $region56: #{tpu_custom_call.1} parent=1 // pred_region
      %s1482 = ssub.s32 16, 16
      %1483 = vsyncadd [#allocation5], %s1482
      %s1485 = sshll.u32 [#allocation8], 4
      %s1486 = int_to_ptr.vmem [resolvable:$true] %s1485
      %1488 = dma.vmem_to_hbm [thread:$0]  %s1486, 16, %s11, [#allocation5]
    $region57: #{tpu_custom_call.1} parent=1 // pred_fallthru
      _
    // Predicated region
    $region58: #{tpu_custom_call.1} parent=1 // pred_check
      _
    $region59: #{tpu_custom_call.1} parent=1 // pred_check_branch
      %1490 = sbr.rel (0) target = $region61
    $region60: #{tpu_custom_call.1} parent=1 // pred_region
      %1491 = dma.done [#allocation5], 16
    $region61: #{tpu_custom_call.1} parent=1 // pred_fallthru
      _
    %1492 = vsyncpa [#allocation4], 1
    %1493 = vsyncpa [#allocation7], 1
    %1494 = vsyncpa [#allocation5], 1

</llo_original>
